<compile_context>
chip_gen: v7x
topology: tpu7x:2x2x1
jax: 0.10.0
libtpu: 0.0.40
codegen_flags: <defaults>
</compile_context>

<pallas_src>
import math

import jax
import jax.numpy as jnp
from jax import lax
from jax.experimental import pallas as pl
from jax.experimental.pallas import tpu as pltpu


def _make_mhca_kernel(num_heads: int, head_dim: int):
    inv_scale = 1.0 / math.sqrt(head_dim)

    def kernel(x_ref, q_ref, wq_ref, bq_ref, wk_ref, bk_ref, wv_ref, bv_ref,
               wo_ref, bo_ref, o_ref, k_sc, v_sc, q_sc, acc_sc):
        qi = pl.program_id(2)          # innermost (arbitrary) query-tile axis
        cdt = wo_ref.dtype             # dtype fed to the MXU (input/weight dtype)

        # ---- K / V projection: once per (q-split, batch) pair; kept resident in
        # VMEM scratch for every query tile of this batch element.
        @pl.when(qi == 0)
        def _():
            x = x_ref[0]                                                     # (T, C)
            k = jnp.dot(x, wk_ref[...], preferred_element_type=jnp.float32) + bk_ref[...]
            v = jnp.dot(x, wv_ref[...], preferred_element_type=jnp.float32) + bv_ref[...]
            k_sc[...] = k.astype(k_sc.dtype)
            v_sc[...] = v.astype(v_sc.dtype)

        # ---- Q projection; 1/sqrt(head_dim) folded into Q once (not per-head per
        # score tile).  Stored to a small VMEM scratch so the head loop re-loads
        # slices instead of keeping the whole value live across all heads.
        qf = jnp.dot(q_ref[0], wq_ref[...], preferred_element_type=jnp.float32) + bq_ref[...]
        q_sc[...] = (qf * inv_scale).astype(q_sc.dtype)

        # ---- Fused-output accumulator: full lane-width f32 writes only.
        acc_sc[...] = jnp.zeros_like(acc_sc)

        # ---- Per-head attention with the output projection fused per head.
        # NT scores matmul contracts head_dim of both operands (no kh.T / vxpose);
        # wo is sublane-sliced; no per-head lane-sliced activation stores.
        # (Static unroll: each head's f32 (tile_q, T) temporaries feed only acc_sc,
        #  so live ranges stay bounded per head.)
        for h in range(num_heads):
            lo = h * head_dim
            hi = lo + head_dim
            qh = q_sc[:, lo:hi]                                              # (tile_q, hd)
            kh = k_sc[:, lo:hi]                                              # (T, hd)
            vh = v_sc[:, lo:hi]                                              # (T, hd)
            scores = lax.dot_general(
                qh, kh, (((1,), (1,)), ((), ())),
                preferred_element_type=jnp.float32)                          # (tile_q, T)
            m = jnp.max(scores, axis=-1, keepdims=True)
            e = jnp.exp(scores - m)
            denom = jnp.sum(e, axis=-1, keepdims=True)
            probs = (e * pl.reciprocal(denom, approx=True)).astype(cdt)      # EUP recip
            pv = jnp.dot(probs, vh, preferred_element_type=jnp.float32)      # (tile_q, hd)
            acc_sc[...] += jnp.dot(pv.astype(cdt), wo_ref[lo:hi, :],
                                   preferred_element_type=jnp.float32)

        # Output bias added once at the end; store is lane-dense (tile_q, C).
        o_ref[0] = (acc_sc[...] + bo_ref[...]).astype(o_ref.dtype)

    return kernel


def _vmem_limit_bytes(required: int) -> int:
    """Clamp the requested scoped-VMEM limit to what the local chip actually has."""
    cap = 64 * 1024 * 1024  # conservative default (v7x per-TensorCore VMEM)
    try:
        cap = int(getattr(pltpu.get_tpu_info(), "vmem_capacity_bytes", cap))
    except Exception:
        pass
    # keep ~15% of physical VMEM as headroom for compiler-internal scratch / spills
    return int(max(32 * 1024 * 1024, min(required, cap * 85 // 100)))


def multi_head_cross_modal_attention(x, q, params, *, num_heads,
                                     tile_q=None, q_split=None, mxu_dtype=None):
    """x: (B, T, C) key/value input; q: (B, Tq, C) query input -> (B, Tq, C)."""
    B, T, C = x.shape
    Bq, Tq, Cq = q.shape
    assert Bq == B and Cq == C
    assert C % num_heads == 0
    head_dim = C // num_heads
    out_dtype = q.dtype

    # Split the fused kv projection into separate K / V projections on the host so
    # the kernel never slices a (T, 2C) result mid-lane-tile.
    wq, bq = params["wq"], params["bq"]
    wo, bo = params["wo"], params["bo"]
    wkv, bkv = params["wkv"], params["bkv"]
    wk, wv = wkv[:, :C], wkv[:, C:]
    bk, bv = bkv[:, :C], bkv[:, C:]

    # Optional bf16 MXU path (v6e/v7x): cast weights + activations on the host;
    # softmax / accumulation stay f32 inside the kernel; output stays out_dtype.
    if mxu_dtype is not None:
        cast = lambda a: a.astype(mxu_dtype)
        x, q = cast(x), cast(q)
        wq, bq, wk, bk, wv, bv, wo, bo = map(cast, (wq, bq, wk, bk, wv, bv, wo, bo))
    cdt = x.dtype

    # Query tiling: 256 is MXU-friendly on all of v5e/v6e/v7x; tiny / ragged Tq is
    # handled with a full-extent tile or a partial (clipped) last tile via cdiv.
    if tile_q is None:
        tile_q = Tq if Tq <= 256 else 256
    n_q_tiles = pl.cdiv(Tq, tile_q)

    # Megacore coverage for tiny batch: split the query-tile axis into a leading
    # parallel axis; K/V are re-projected once per (split, batch) pair.
    if q_split is None:
        q_split = 2 if (B == 1 and n_q_tiles >= 2 and n_q_tiles % 2 == 0) else 1
    if q_split < 1 or n_q_tiles % q_split != 0:
        q_split = 1
    n_q_inner = n_q_tiles // q_split

    kernel = _make_mhca_kernel(num_heads, head_dim)

    # Grid-constant operands: whole-array resident in VMEM (no per-step windowing /
    # double-buffering of the weights).
    wspec = pl.BlockSpec(memory_space=pltpu.MemorySpace.VMEM)
    q_idx = lambda s, b, qi: (b, s * n_q_inner + qi, 0)

    isz = jnp.dtype(cdt).itemsize
    osz = jnp.dtype(out_dtype).itemsize
    need = (2 * T * C * isz                       # double-buffered x block
            + 2 * tile_q * C * isz                # double-buffered q block
            + 2 * tile_q * C * osz                # double-buffered out block
            + (4 * C * C + 4 * C) * isz           # resident weights/biases
            + 2 * T * C * isz                     # K / V scratch
            + tile_q * C * isz                    # scaled-Q scratch
            + tile_q * C * 4                      # f32 accumulator
            + 2 * tile_q * max(T, 128) * 4)       # per-head f32 scores/exp temporaries
    vmem_limit = _vmem_limit_bytes(int(need * 1.25) + (8 << 20))

    return pl.pallas_call(
        kernel,
        out_shape=jax.ShapeDtypeStruct((B, Tq, C), out_dtype),
        grid_spec=pltpu.PrefetchScalarGridSpec(
            num_scalar_prefetch=0,
            grid=(q_split, B, n_q_inner),
            in_specs=[
                pl.BlockSpec((1, T, C), lambda s, b, qi: (b, 0, 0)),   # x (KV input)
                pl.BlockSpec((1, tile_q, C), q_idx),                   # q
                wspec, wspec,                                          # wq, bq
                wspec, wspec,                                          # wk, bk
                wspec, wspec,                                          # wv, bv
                wspec, wspec,                                          # wo, bo
            ],
            out_specs=pl.BlockSpec((1, tile_q, C), q_idx),
            scratch_shapes=[
                pltpu.VMEM((T, C), cdt),               # projected K (per batch elem)
                pltpu.VMEM((T, C), cdt),               # projected V (per batch elem)
                pltpu.VMEM((tile_q, C), cdt),          # scaled projected Q
                pltpu.VMEM((tile_q, C), jnp.float32),  # fused out-proj accumulator
            ],
        ),
        compiler_params=pltpu.CompilerParams(
            dimension_semantics=("parallel", "parallel", "arbitrary"),
            vmem_limit_bytes=vmem_limit,
        ),
    )(x, q, wq, bq, wk, bk, wv, bv, wo, bo)


def reference(x, q, params, *, num_heads):
    """Plain-JAX reference matching the PyTorch forward."""
    B, T, C = x.shape
    Tq = q.shape[1]
    hd = C // num_heads
    scale = math.sqrt(hd)
    Q = q @ params["wq"] + params["bq"][0]
    KV = x @ params["wkv"] + params["bkv"][0]
    K, V = KV[..., :C], KV[..., C:]
    Qh = Q.reshape(B, Tq, num_heads, hd).transpose(0, 2, 1, 3)
    Kh = K.reshape(B, T, num_heads, hd).transpose(0, 2, 1, 3)
    Vh = V.reshape(B, T, num_heads, hd).transpose(0, 2, 1, 3)
    scores = jnp.einsum("bhqd,bhkd->bhqk", Qh, Kh) / scale
    probs = jax.nn.softmax(scores, axis=-1)
    out = jnp.einsum("bhqk,bhkd->bhqd", probs, Vh).transpose(0, 2, 1, 3).reshape(B, Tq, C)
    return out @ params["wo"] + params["bo"][0]


if __name__ == "__main__":
    B, T_kv, T_q = 2, 8, 4
    d_model, num_heads = 32, 4

    key = jax.random.PRNGKey(0)
    k_x, k_q, k_wq, k_bq, k_wkv, k_bkv, k_wo, k_bo = jax.random.split(key, 8)

    # Deterministic synthetic parameters (nn.Linear-style scaled init).
    s = 1.0 / math.sqrt(d_model)
    params = {
        "wq": jax.random.uniform(k_wq, (d_model, d_model), jnp.float32, -s, s),
        "bq": jax.random.uniform(k_bq, (1, d_model), jnp.float32, -s, s),
        "wkv": jax.random.uniform(k_wkv, (d_model, 2 * d_model), jnp.float32, -s, s),
        "bkv": jax.random.uniform(k_bkv, (1, 2 * d_model), jnp.float32, -s, s),
        "wo": jax.random.uniform(k_wo, (d_model, d_model), jnp.float32, -s, s),
        "bo": jax.random.uniform(k_bo, (1, d_model), jnp.float32, -s, s),
    }

    x = jax.random.normal(k_x, (B, T_kv, d_model), jnp.float32)   # key/value input
    q = jax.random.normal(k_q, (B, T_q, d_model), jnp.float32)    # query input

    ref = reference(x, q, params, num_heads=num_heads)

    # f32 path (module semantics; approx-reciprocal softmax -> loosened tolerance).
    out = multi_head_cross_modal_attention(x, q, params, num_heads=num_heads)
    out = jax.block_until_ready(out)
    assert out.shape == (B, T_q, d_model)
    assert jnp.allclose(out, ref, atol=1e-2, rtol=1e-2), "f32 kernel mismatch vs reference"

    # bf16 MXU path (feeds v6e/v7x's 256-wide MXU bf16; softmax stays f32).
    out_bf16 = multi_head_cross_modal_attention(
        x, q, params, num_heads=num_heads, mxu_dtype=jnp.bfloat16)
    out_bf16 = jax.block_until_ready(out_bf16)
    assert out_bf16.shape == (B, T_q, d_model)
    assert float(jnp.max(jnp.abs(out_bf16 - ref))) < 0.25, "bf16 kernel grossly off"

    print("KERNEL_OK")
</pallas_src>

<mosaic_0001>
module attributes {stable_mosaic.version = 11 : i64} {
  func.func @kernel(%arg0: i32, %arg1: i32, %arg2: i32, %arg3: memref<1x8x32xf32, #tpu.memory_space<vmem>>, %arg4: memref<1x4x32xf32, #tpu.memory_space<vmem>>, %arg5: memref<32x32xf32, #tpu.memory_space<vmem>>, %arg6: memref<1x32xf32, #tpu.memory_space<vmem>>, %arg7: memref<32x32xf32, #tpu.memory_space<vmem>>, %arg8: memref<1x32xf32, #tpu.memory_space<vmem>>, %arg9: memref<32x32xf32, #tpu.memory_space<vmem>>, %arg10: memref<1x32xf32, #tpu.memory_space<vmem>>, %arg11: memref<32x32xf32, #tpu.memory_space<vmem>>, %arg12: memref<1x32xf32, #tpu.memory_space<vmem>>, %arg13: memref<1x4x32xf32, #tpu.memory_space<vmem>>, %arg14: memref<8x32xf32, #tpu.memory_space<vmem>>, %arg15: memref<8x32xf32, #tpu.memory_space<vmem>>, %arg16: memref<4x32xf32, #tpu.memory_space<vmem>>, %arg17: memref<4x32xf32, #tpu.memory_space<vmem>>) attributes {dimension_semantics = [#tpu.dimension_semantics<parallel>, #tpu.dimension_semantics<parallel>, #tpu.dimension_semantics<arbitrary>], iteration_bounds = array<i64: 1, 2, 1>, scalar_prefetch = 0 : i64, scratch_operands = 4 : i64, tpu.core_type = #tpu.core_type<tc>, window_params = [{transform_indices = @transform_0, window_bounds = array<i64: 1, 8, 32>}, {transform_indices = @transform_1, window_bounds = array<i64: 1, 4, 32>}, {pipeline_mode = #tpu.pipeline_mode<synchronous>, transform_indices = @transform_2, window_bounds = array<i64: 32, 32>}, {pipeline_mode = #tpu.pipeline_mode<synchronous>, transform_indices = @transform_3, window_bounds = array<i64: 1, 32>}, {pipeline_mode = #tpu.pipeline_mode<synchronous>, transform_indices = @transform_4, window_bounds = array<i64: 32, 32>}, {pipeline_mode = #tpu.pipeline_mode<synchronous>, transform_indices = @transform_5, window_bounds = array<i64: 1, 32>}, {pipeline_mode = #tpu.pipeline_mode<synchronous>, transform_indices = @transform_6, window_bounds = array<i64: 32, 32>}, {pipeline_mode = #tpu.pipeline_mode<synchronous>, transform_indices = @transform_7, window_bounds = array<i64: 1, 32>}, {pipeline_mode = #tpu.pipeline_mode<synchronous>, transform_indices = @transform_8, window_bounds = array<i64: 32, 32>}, {pipeline_mode = #tpu.pipeline_mode<synchronous>, transform_indices = @transform_9, window_bounds = array<i64: 1, 32>}, {transform_indices = @transform_10, window_bounds = array<i64: 1, 4, 32>}]} {
    %c0_i32 = arith.constant 0 : i32
    %0 = arith.cmpi eq, %arg2, %c0_i32 : i32
    %1 = arith.extui %0 : i1 to i32
    %c0_i32_0 = arith.constant 0 : i32
    %2 = arith.cmpi ne, %1, %c0_i32_0 : i32
    scf.if %2 {
      %c0_85 = arith.constant 0 : index
      %c0_86 = arith.constant 0 : index
      %c0_87 = arith.constant 0 : index
      %102 = vector.load %arg3[%c0_85, %c0_86, %c0_87] : memref<1x8x32xf32, #tpu.memory_space<vmem>>, vector<1x8x32xf32>
      %103 = vector.shape_cast %102 : vector<1x8x32xf32> to vector<8x32xf32>
      %c0_88 = arith.constant 0 : index
      %c0_89 = arith.constant 0 : index
      %104 = vector.load %arg7[%c0_88, %c0_89] : memref<32x32xf32, #tpu.memory_space<vmem>>, vector<32x32xf32>
      %cst_90 = arith.constant dense<0.000000e+00> : vector<8x32xf32>
      %105 = tpu.matmul %103, %104, %cst_90 {dimension_numbers = #tpu.dot_dimension_numbers<[1], [0], [0], [1], [0, 0, 1, 1], [], []>} : vector<8x32xf32>, vector<32x32xf32>, vector<8x32xf32> -> vector<8x32xf32>
      %c0_91 = arith.constant 0 : index
      %c0_92 = arith.constant 0 : index
      %106 = vector.load %arg8[%c0_91, %c0_92] : memref<1x32xf32, #tpu.memory_space<vmem>>, vector<1x32xf32>
      %107 = vector.broadcast %106 : vector<1x32xf32> to vector<8x32xf32>
      %108 = arith.addf %105, %107 : vector<8x32xf32>
      %c0_93 = arith.constant 0 : index
      %c0_94 = arith.constant 0 : index
      %109 = vector.load %arg9[%c0_93, %c0_94] : memref<32x32xf32, #tpu.memory_space<vmem>>, vector<32x32xf32>
      %cst_95 = arith.constant dense<0.000000e+00> : vector<8x32xf32>
      %110 = tpu.matmul %103, %109, %cst_95 {dimension_numbers = #tpu.dot_dimension_numbers<[1], [0], [0], [1], [0, 0, 1, 1], [], []>} : vector<8x32xf32>, vector<32x32xf32>, vector<8x32xf32> -> vector<8x32xf32>
      %c0_96 = arith.constant 0 : index
      %c0_97 = arith.constant 0 : index
      %111 = vector.load %arg10[%c0_96, %c0_97] : memref<1x32xf32, #tpu.memory_space<vmem>>, vector<1x32xf32>
      %112 = vector.broadcast %111 : vector<1x32xf32> to vector<8x32xf32>
      %113 = arith.addf %110, %112 : vector<8x32xf32>
      %c0_98 = arith.constant 0 : index
      %c0_99 = arith.constant 0 : index
      %114 = vector.load %arg14[%c0_98, %c0_99] : memref<8x32xf32, #tpu.memory_space<vmem>>, vector<8x32xf32>
      tpu.vector_store %arg14[%c0_98, %c0_99], %108 {strides = array<i32>} : memref<8x32xf32, #tpu.memory_space<vmem>>, vector<8x32xf32>,
      %c0_100 = arith.constant 0 : index
      %c0_101 = arith.constant 0 : index
      %115 = vector.load %arg15[%c0_100, %c0_101] : memref<8x32xf32, #tpu.memory_space<vmem>>, vector<8x32xf32>
      tpu.vector_store %arg15[%c0_100, %c0_101], %113 {strides = array<i32>} : memref<8x32xf32, #tpu.memory_space<vmem>>, vector<8x32xf32>,
    } else {
    }
    %c0 = arith.constant 0 : index
    %c0_1 = arith.constant 0 : index
    %c0_2 = arith.constant 0 : index
    %3 = vector.load %arg4[%c0, %c0_1, %c0_2] : memref<1x4x32xf32, #tpu.memory_space<vmem>>, vector<1x4x32xf32>
    %4 = vector.shape_cast %3 : vector<1x4x32xf32> to vector<4x32xf32>
    %c0_3 = arith.constant 0 : index
    %c0_4 = arith.constant 0 : index
    %5 = vector.load %arg5[%c0_3, %c0_4] : memref<32x32xf32, #tpu.memory_space<vmem>>, vector<32x32xf32>
    %cst = arith.constant dense<0.000000e+00> : vector<4x32xf32>
    %6 = tpu.matmul %4, %5, %cst {dimension_numbers = #tpu.dot_dimension_numbers<[1], [0], [0], [1], [0, 0, 1, 1], [], []>} : vector<4x32xf32>, vector<32x32xf32>, vector<4x32xf32> -> vector<4x32xf32>
    %c0_5 = arith.constant 0 : index
    %c0_6 = arith.constant 0 : index
    %7 = vector.load %arg6[%c0_5, %c0_6] : memref<1x32xf32, #tpu.memory_space<vmem>>, vector<1x32xf32>
    %8 = vector.broadcast %7 : vector<1x32xf32> to vector<4x32xf32>
    %9 = arith.addf %6, %8 : vector<4x32xf32>
    %cst_7 = arith.constant 0.353553385 : f32
    %10 = vector.broadcast %cst_7 : f32 to vector<4x32xf32>
    %11 = arith.mulf %9, %10 : vector<4x32xf32>
    %c0_8 = arith.constant 0 : index
    %c0_9 = arith.constant 0 : index
    %12 = vector.load %arg16[%c0_8, %c0_9] : memref<4x32xf32, #tpu.memory_space<vmem>>, vector<4x32xf32>
    tpu.vector_store %arg16[%c0_8, %c0_9], %11 {strides = array<i32>} : memref<4x32xf32, #tpu.memory_space<vmem>>, vector<4x32xf32>,
    %cst_10 = arith.constant 0.000000e+00 : f32
    %13 = vector.broadcast %cst_10 : f32 to vector<4x32xf32>
    %c0_11 = arith.constant 0 : index
    %c0_12 = arith.constant 0 : index
    %14 = vector.load %arg17[%c0_11, %c0_12] : memref<4x32xf32, #tpu.memory_space<vmem>>, vector<4x32xf32>
    tpu.vector_store %arg17[%c0_11, %c0_12], %13 {strides = array<i32>} : memref<4x32xf32, #tpu.memory_space<vmem>>, vector<4x32xf32>,
    %c0_13 = arith.constant 0 : index
    %c0_14 = arith.constant 0 : index
    %15 = vector.load %arg16[%c0_13, %c0_14] : memref<4x32xf32, #tpu.memory_space<vmem>>, vector<4x8xf32>
    %c0_15 = arith.constant 0 : index
    %c0_16 = arith.constant 0 : index
    %16 = vector.load %arg14[%c0_15, %c0_16] : memref<8x32xf32, #tpu.memory_space<vmem>>, vector<8x8xf32>
    %c0_17 = arith.constant 0 : index
    %c0_18 = arith.constant 0 : index
    %17 = vector.load %arg15[%c0_17, %c0_18] : memref<8x32xf32, #tpu.memory_space<vmem>>, vector<8x8xf32>
    %cst_19 = arith.constant dense<0.000000e+00> : vector<4x8xf32>
    %18 = tpu.matmul %15, %16, %cst_19 {dimension_numbers = #tpu.dot_dimension_numbers<[1], [1], [0], [0], [0, 0, 1, 0], [], []>} : vector<4x8xf32>, vector<8x8xf32>, vector<4x8xf32> -> vector<4x8xf32>
    %cst_20 = arith.constant dense<0xFF800000> : vector<4xf32>
    %19 = vector.multi_reduction <maximumf>, %18, %cst_20 [1] : vector<4x8xf32> to vector<4xf32>
    %20 = vector.shape_cast %19 : vector<4xf32> to vector<4x1xf32>
    %21 = vector.broadcast %20 : vector<4x1xf32> to vector<4x8xf32>
    %22 = arith.subf %18, %21 : vector<4x8xf32>
    %23 = math.exp %22 : vector<4x8xf32>
    %cst_21 = arith.constant dense<0.000000e+00> : vector<4xf32>
    %24 = vector.multi_reduction <add>, %23, %cst_21 [1] : vector<4x8xf32> to vector<4xf32>
    %25 = vector.shape_cast %24 : vector<4xf32> to vector<4x1xf32>
    %26 = tpu.reciprocal %25 {approx = true} : vector<4x1xf32> -> vector<4x1xf32>
    %27 = vector.broadcast %26 : vector<4x1xf32> to vector<4x8xf32>
    %28 = arith.mulf %23, %27 : vector<4x8xf32>
    %cst_22 = arith.constant dense<0.000000e+00> : vector<4x8xf32>
    %29 = tpu.matmul %28, %17, %cst_22 {dimension_numbers = #tpu.dot_dimension_numbers<[1], [0], [0], [1], [0, 0, 1, 1], [], []>} : vector<4x8xf32>, vector<8x8xf32>, vector<4x8xf32> -> vector<4x8xf32>
    %c0_23 = arith.constant 0 : index
    %c0_24 = arith.constant 0 : index
    %30 = vector.load %arg17[%c0_23, %c0_24] : memref<4x32xf32, #tpu.memory_space<vmem>>, vector<4x32xf32>
    %c0_25 = arith.constant 0 : index
    %c0_26 = arith.constant 0 : index
    %31 = vector.load %arg11[%c0_25, %c0_26] : memref<32x32xf32, #tpu.memory_space<vmem>>, vector<8x32xf32>
    %cst_27 = arith.constant dense<0.000000e+00> : vector<4x32xf32>
    %32 = tpu.matmul %29, %31, %cst_27 {dimension_numbers = #tpu.dot_dimension_numbers<[1], [0], [0], [1], [0, 0, 1, 1], [], []>} : vector<4x8xf32>, vector<8x32xf32>, vector<4x32xf32> -> vector<4x32xf32>
    %33 = arith.addf %30, %32 : vector<4x32xf32>
    %c0_28 = arith.constant 0 : index
    %c0_29 = arith.constant 0 : index
    %34 = vector.load %arg17[%c0_28, %c0_29] : memref<4x32xf32, #tpu.memory_space<vmem>>, vector<4x32xf32>
    tpu.vector_store %arg17[%c0_28, %c0_29], %33 {strides = array<i32>} : memref<4x32xf32, #tpu.memory_space<vmem>>, vector<4x32xf32>,
    %c0_30 = arith.constant 0 : index
    %c8 = arith.constant 8 : index
    %35 = vector.load %arg16[%c0_30, %c8] : memref<4x32xf32, #tpu.memory_space<vmem>>, vector<4x8xf32>
    %c0_31 = arith.constant 0 : index
    %c8_32 = arith.constant 8 : index
    %36 = vector.load %arg14[%c0_31, %c8_32] : memref<8x32xf32, #tpu.memory_space<vmem>>, vector<8x8xf32>
    %c0_33 = arith.constant 0 : index
    %c8_34 = arith.constant 8 : index
    %37 = vector.load %arg15[%c0_33, %c8_34] : memref<8x32xf32, #tpu.memory_space<vmem>>, vector<8x8xf32>
    %cst_35 = arith.constant dense<0.000000e+00> : vector<4x8xf32>
    %38 = tpu.matmul %35, %36, %cst_35 {dimension_numbers = #tpu.dot_dimension_numbers<[1], [1], [0], [0], [0, 0, 1, 0], [], []>} : vector<4x8xf32>, vector<8x8xf32>, vector<4x8xf32> -> vector<4x8xf32>
    %cst_36 = arith.constant dense<0xFF800000> : vector<4xf32>
    %39 = vector.multi_reduction <maximumf>, %38, %cst_36 [1] : vector<4x8xf32> to vector<4xf32>
    %40 = vector.shape_cast %39 : vector<4xf32> to vector<4x1xf32>
    %41 = vector.broadcast %40 : vector<4x1xf32> to vector<4x8xf32>
    %42 = arith.subf %38, %41 : vector<4x8xf32>
    %43 = math.exp %42 : vector<4x8xf32>
    %cst_37 = arith.constant dense<0.000000e+00> : vector<4xf32>
    %44 = vector.multi_reduction <add>, %43, %cst_37 [1] : vector<4x8xf32> to vector<4xf32>
    %45 = vector.shape_cast %44 : vector<4xf32> to vector<4x1xf32>
    %46 = tpu.reciprocal %45 {approx = true} : vector<4x1xf32> -> vector<4x1xf32>
    %47 = vector.broadcast %46 : vector<4x1xf32> to vector<4x8xf32>
    %48 = arith.mulf %43, %47 : vector<4x8xf32>
    %cst_38 = arith.constant dense<0.000000e+00> : vector<4x8xf32>
    %49 = tpu.matmul %48, %37, %cst_38 {dimension_numbers = #tpu.dot_dimension_numbers<[1], [0], [0], [1], [0, 0, 1, 1], [], []>} : vector<4x8xf32>, vector<8x8xf32>, vector<4x8xf32> -> vector<4x8xf32>
    %c0_39 = arith.constant 0 : index
    %c0_40 = arith.constant 0 : index
    %50 = vector.load %arg17[%c0_39, %c0_40] : memref<4x32xf32, #tpu.memory_space<vmem>>, vector<4x32xf32>
    %c8_41 = arith.constant 8 : index
    %c0_42 = arith.constant 0 : index
    %51 = vector.load %arg11[%c8_41, %c0_42] : memref<32x32xf32, #tpu.memory_space<vmem>>, vector<8x32xf32>
    %cst_43 = arith.constant dense<0.000000e+00> : vector<4x32xf32>
    %52 = tpu.matmul %49, %51, %cst_43 {dimension_numbers = #tpu.dot_dimension_numbers<[1], [0], [0], [1], [0, 0, 1, 1], [], []>} : vector<4x8xf32>, vector<8x32xf32>, vector<4x32xf32> -> vector<4x32xf32>
    %53 = arith.addf %50, %52 : vector<4x32xf32>
    %c0_44 = arith.constant 0 : index
    %c0_45 = arith.constant 0 : index
    %54 = vector.load %arg17[%c0_44, %c0_45] : memref<4x32xf32, #tpu.memory_space<vmem>>, vector<4x32xf32>
    tpu.vector_store %arg17[%c0_44, %c0_45], %53 {strides = array<i32>} : memref<4x32xf32, #tpu.memory_space<vmem>>, vector<4x32xf32>,
    %c0_46 = arith.constant 0 : index
    %c16 = arith.constant 16 : index
    %55 = vector.load %arg16[%c0_46, %c16] : memref<4x32xf32, #tpu.memory_space<vmem>>, vector<4x8xf32>
    %c0_47 = arith.constant 0 : index
    %c16_48 = arith.constant 16 : index
    %56 = vector.load %arg14[%c0_47, %c16_48] : memref<8x32xf32, #tpu.memory_space<vmem>>, vector<8x8xf32>
    %c0_49 = arith.constant 0 : index
    %c16_50 = arith.constant 16 : index
    %57 = vector.load %arg15[%c0_49, %c16_50] : memref<8x32xf32, #tpu.memory_space<vmem>>, vector<8x8xf32>
    %cst_51 = arith.constant dense<0.000000e+00> : vector<4x8xf32>
    %58 = tpu.matmul %55, %56, %cst_51 {dimension_numbers = #tpu.dot_dimension_numbers<[1], [1], [0], [0], [0, 0, 1, 0], [], []>} : vector<4x8xf32>, vector<8x8xf32>, vector<4x8xf32> -> vector<4x8xf32>
    %cst_52 = arith.constant dense<0xFF800000> : vector<4xf32>
    %59 = vector.multi_reduction <maximumf>, %58, %cst_52 [1] : vector<4x8xf32> to vector<4xf32>
    %60 = vector.shape_cast %59 : vector<4xf32> to vector<4x1xf32>
    %61 = vector.broadcast %60 : vector<4x1xf32> to vector<4x8xf32>
    %62 = arith.subf %58, %61 : vector<4x8xf32>
    %63 = math.exp %62 : vector<4x8xf32>
    %cst_53 = arith.constant dense<0.000000e+00> : vector<4xf32>
    %64 = vector.multi_reduction <add>, %63, %cst_53 [1] : vector<4x8xf32> to vector<4xf32>
    %65 = vector.shape_cast %64 : vector<4xf32> to vector<4x1xf32>
    %66 = tpu.reciprocal %65 {approx = true} : vector<4x1xf32> -> vector<4x1xf32>
    %67 = vector.broadcast %66 : vector<4x1xf32> to vector<4x8xf32>
    %68 = arith.mulf %63, %67 : vector<4x8xf32>
    %cst_54 = arith.constant dense<0.000000e+00> : vector<4x8xf32>
    %69 = tpu.matmul %68, %57, %cst_54 {dimension_numbers = #tpu.dot_dimension_numbers<[1], [0], [0], [1], [0, 0, 1, 1], [], []>} : vector<4x8xf32>, vector<8x8xf32>, vector<4x8xf32> -> vector<4x8xf32>
    %c0_55 = arith.constant 0 : index
    %c0_56 = arith.constant 0 : index
    %70 = vector.load %arg17[%c0_55, %c0_56] : memref<4x32xf32, #tpu.memory_space<vmem>>, vector<4x32xf32>
    %c16_57 = arith.constant 16 : index
    %c0_58 = arith.constant 0 : index
    %71 = vector.load %arg11[%c16_57, %c0_58] : memref<32x32xf32, #tpu.memory_space<vmem>>, vector<8x32xf32>
    %cst_59 = arith.constant dense<0.000000e+00> : vector<4x32xf32>
    %72 = tpu.matmul %69, %71, %cst_59 {dimension_numbers = #tpu.dot_dimension_numbers<[1], [0], [0], [1], [0, 0, 1, 1], [], []>} : vector<4x8xf32>, vector<8x32xf32>, vector<4x32xf32> -> vector<4x32xf32>
    %73 = arith.addf %70, %72 : vector<4x32xf32>
    %c0_60 = arith.constant 0 : index
    %c0_61 = arith.constant 0 : index
    %74 = vector.load %arg17[%c0_60, %c0_61] : memref<4x32xf32, #tpu.memory_space<vmem>>, vector<4x32xf32>
    tpu.vector_store %arg17[%c0_60, %c0_61], %73 {strides = array<i32>} : memref<4x32xf32, #tpu.memory_space<vmem>>, vector<4x32xf32>,
    %c0_62 = arith.constant 0 : index
    %c24 = arith.constant 24 : index
    %75 = vector.load %arg16[%c0_62, %c24] : memref<4x32xf32, #tpu.memory_space<vmem>>, vector<4x8xf32>
    %c0_63 = arith.constant 0 : index
    %c24_64 = arith.constant 24 : index
    %76 = vector.load %arg14[%c0_63, %c24_64] : memref<8x32xf32, #tpu.memory_space<vmem>>, vector<8x8xf32>
    %c0_65 = arith.constant 0 : index
    %c24_66 = arith.constant 24 : index
    %77 = vector.load %arg15[%c0_65, %c24_66] : memref<8x32xf32, #tpu.memory_space<vmem>>, vector<8x8xf32>
    %cst_67 = arith.constant dense<0.000000e+00> : vector<4x8xf32>
    %78 = tpu.matmul %75, %76, %cst_67 {dimension_numbers = #tpu.dot_dimension_numbers<[1], [1], [0], [0], [0, 0, 1, 0], [], []>} : vector<4x8xf32>, vector<8x8xf32>, vector<4x8xf32> -> vector<4x8xf32>
    %cst_68 = arith.constant dense<0xFF800000> : vector<4xf32>
    %79 = vector.multi_reduction <maximumf>, %78, %cst_68 [1] : vector<4x8xf32> to vector<4xf32>
    %80 = vector.shape_cast %79 : vector<4xf32> to vector<4x1xf32>
    %81 = vector.broadcast %80 : vector<4x1xf32> to vector<4x8xf32>
    %82 = arith.subf %78, %81 : vector<4x8xf32>
    %83 = math.exp %82 : vector<4x8xf32>
    %cst_69 = arith.constant dense<0.000000e+00> : vector<4xf32>
    %84 = vector.multi_reduction <add>, %83, %cst_69 [1] : vector<4x8xf32> to vector<4xf32>
    %85 = vector.shape_cast %84 : vector<4xf32> to vector<4x1xf32>
    %86 = tpu.reciprocal %85 {approx = true} : vector<4x1xf32> -> vector<4x1xf32>
    %87 = vector.broadcast %86 : vector<4x1xf32> to vector<4x8xf32>
    %88 = arith.mulf %83, %87 : vector<4x8xf32>
    %cst_70 = arith.constant dense<0.000000e+00> : vector<4x8xf32>
    %89 = tpu.matmul %88, %77, %cst_70 {dimension_numbers = #tpu.dot_dimension_numbers<[1], [0], [0], [1], [0, 0, 1, 1], [], []>} : vector<4x8xf32>, vector<8x8xf32>, vector<4x8xf32> -> vector<4x8xf32>
    %c0_71 = arith.constant 0 : index
    %c0_72 = arith.constant 0 : index
    %90 = vector.load %arg17[%c0_71, %c0_72] : memref<4x32xf32, #tpu.memory_space<vmem>>, vector<4x32xf32>
    %c24_73 = arith.constant 24 : index
    %c0_74 = arith.constant 0 : index
    %91 = vector.load %arg11[%c24_73, %c0_74] : memref<32x32xf32, #tpu.memory_space<vmem>>, vector<8x32xf32>
    %cst_75 = arith.constant dense<0.000000e+00> : vector<4x32xf32>
    %92 = tpu.matmul %89, %91, %cst_75 {dimension_numbers = #tpu.dot_dimension_numbers<[1], [0], [0], [1], [0, 0, 1, 1], [], []>} : vector<4x8xf32>, vector<8x32xf32>, vector<4x32xf32> -> vector<4x32xf32>
    %93 = arith.addf %90, %92 : vector<4x32xf32>
    %c0_76 = arith.constant 0 : index
    %c0_77 = arith.constant 0 : index
    %94 = vector.load %arg17[%c0_76, %c0_77] : memref<4x32xf32, #tpu.memory_space<vmem>>, vector<4x32xf32>
    tpu.vector_store %arg17[%c0_76, %c0_77], %93 {strides = array<i32>} : memref<4x32xf32, #tpu.memory_space<vmem>>, vector<4x32xf32>,
    %c0_78 = arith.constant 0 : index
    %c0_79 = arith.constant 0 : index
    %95 = vector.load %arg17[%c0_78, %c0_79] : memref<4x32xf32, #tpu.memory_space<vmem>>, vector<4x32xf32>
    %c0_80 = arith.constant 0 : index
    %c0_81 = arith.constant 0 : index
    %96 = vector.load %arg12[%c0_80, %c0_81] : memref<1x32xf32, #tpu.memory_space<vmem>>, vector<1x32xf32>
    %97 = vector.broadcast %96 : vector<1x32xf32> to vector<4x32xf32>
    %98 = arith.addf %95, %97 : vector<4x32xf32>
    %c0_82 = arith.constant 0 : index
    %c0_83 = arith.constant 0 : index
    %c0_84 = arith.constant 0 : index
    %99 = vector.load %arg13[%c0_82, %c0_83, %c0_84] : memref<1x4x32xf32, #tpu.memory_space<vmem>>, vector<1x4x32xf32>
    %100 = vector.shape_cast %99 : vector<1x4x32xf32> to vector<4x32xf32>
    %101 = vector.shape_cast %98 : vector<4x32xf32> to vector<1x4x32xf32>
    tpu.vector_store %arg13[%c0_82, %c0_83, %c0_84], %101 {strides = array<i32>} : memref<1x4x32xf32, #tpu.memory_space<vmem>>, vector<1x4x32xf32>,
    return
  }
  func.func @transform_0(%arg0: i32, %arg1: i32, %arg2: i32) -> (i32, i32, i32) {
    %c0_i32 = arith.constant 0 : i32
    %c0_i32_0 = arith.constant 0 : i32
    %c0_i32_1 = arith.constant 0 : i32
    return %arg1, %c0_i32, %c0_i32_0 : i32, i32, i32
  }
  func.func @transform_1(%arg0: i32, %arg1: i32, %arg2: i32) -> (i32, i32, i32) {
    %c1_i32 = arith.constant 1 : i32
    %0 = arith.muli %arg0, %c1_i32 : i32
    %1 = arith.addi %0, %arg2 : i32
    %c0_i32 = arith.constant 0 : i32
    %c0_i32_0 = arith.constant 0 : i32
    return %arg1, %1, %c0_i32 : i32, i32, i32
  }
  func.func @transform_2(%arg0: i32, %arg1: i32, %arg2: i32) -> (i32, i32) {
    %c0_i32 = arith.constant 0 : i32
    %c0_i32_0 = arith.constant 0 : i32
    %c0_i32_1 = arith.constant 0 : i32
    return %c0_i32, %c0_i32_0 : i32, i32
  }
  func.func @transform_3(%arg0: i32, %arg1: i32, %arg2: i32) -> (i32, i32) {
    %c0_i32 = arith.constant 0 : i32
    %c0_i32_0 = arith.constant 0 : i32
    %c0_i32_1 = arith.constant 0 : i32
    return %c0_i32, %c0_i32_0 : i32, i32
  }
  func.func @transform_4(%arg0: i32, %arg1: i32, %arg2: i32) -> (i32, i32) {
    %c0_i32 = arith.constant 0 : i32
    %c0_i32_0 = arith.constant 0 : i32
    %c0_i32_1 = arith.constant 0 : i32
    return %c0_i32, %c0_i32_0 : i32, i32
  }
  func.func @transform_5(%arg0: i32, %arg1: i32, %arg2: i32) -> (i32, i32) {
    %c0_i32 = arith.constant 0 : i32
    %c0_i32_0 = arith.constant 0 : i32
    %c0_i32_1 = arith.constant 0 : i32
    return %c0_i32, %c0_i32_0 : i32, i32
  }
  func.func @transform_6(%arg0: i32, %arg1: i32, %arg2: i32) -> (i32, i32) {
    %c0_i32 = arith.constant 0 : i32
    %c0_i32_0 = arith.constant 0 : i32
    %c0_i32_1 = arith.constant 0 : i32
    return %c0_i32, %c0_i32_0 : i32, i32
  }
  func.func @transform_7(%arg0: i32, %arg1: i32, %arg2: i32) -> (i32, i32) {
    %c0_i32 = arith.constant 0 : i32
    %c0_i32_0 = arith.constant 0 : i32
    %c0_i32_1 = arith.constant 0 : i32
    return %c0_i32, %c0_i32_0 : i32, i32
  }
  func.func @transform_8(%arg0: i32, %arg1: i32, %arg2: i32) -> (i32, i32) {
    %c0_i32 = arith.constant 0 : i32
    %c0_i32_0 = arith.constant 0 : i32
    %c0_i32_1 = arith.constant 0 : i32
    return %c0_i32, %c0_i32_0 : i32, i32
  }
  func.func @transform_9(%arg0: i32, %arg1: i32, %arg2: i32) -> (i32, i32) {
    %c0_i32 = arith.constant 0 : i32
    %c0_i32_0 = arith.constant 0 : i32
    %c0_i32_1 = arith.constant 0 : i32
    return %c0_i32, %c0_i32_0 : i32, i32
  }
  func.func @transform_10(%arg0: i32, %arg1: i32, %arg2: i32) -> (i32, i32, i32) {
    %c1_i32 = arith.constant 1 : i32
    %0 = arith.muli %arg0, %c1_i32 : i32
    %1 = arith.addi %0, %arg2 : i32
    %c0_i32 = arith.constant 0 : i32
    %c0_i32_0 = arith.constant 0 : i32
    return %arg1, %1, %c0_i32 : i32, i32, i32
  }
}

</mosaic_0001>

<llo_original>
// kernel: tpu_custom_call.1
$region0: #{tpu_custom_call.1}
  #allocation0 [shape = 'u32[]', space=smem, size = 0x4, offset = 0x4, fixed_abs, tag = 'smem constant byte address 0x4 - core index']
  #allocation1 [shape = 'u32[144,128]{1,0:T(1,128)}', space=vmem, size = 0x12000, scoped, tag = 'internal scratch']
  #allocation2 [shape = 'f32[8,32]{1,0:T(8,128)}', space=vmem, size = 0x1000, scoped, tag = 'scratch operand']
  #allocation3 [shape = 'f32[8,32]{1,0:T(8,128)}', space=vmem, size = 0x1000, scoped, tag = 'scratch operand']
  #allocation4 [shape = 'f32[4,32]{1,0:T(4,128)}', space=vmem, size = 0x800, scoped, tag = 'scratch operand']
  #allocation5 [shape = 'f32[4,32]{1,0:T(4,128)}', space=vmem, size = 0x800, scoped, tag = 'scratch operand']
  %s0 = inlined_call_operand.hbm [shape: f32[2,8,32], index: 0, kind: input, shape index: {}]
  %s1 = inlined_call_operand.hbm [shape: f32[2,4,32], index: 1, kind: input, shape index: {}]
  %s2 = inlined_call_operand.hbm [shape: f32[32,32], index: 2, kind: input, shape index: {}]
  %s3 = inlined_call_operand.vmem [shape: f32[1,32], index: 3, kind: input, shape index: {}]
  %s4 = inlined_call_operand.hbm [shape: f32[32,32], index: 4, kind: input, shape index: {}]
  %s5 = inlined_call_operand.vmem [shape: f32[1,32], index: 5, kind: input, shape index: {}]
  %s6 = inlined_call_operand.hbm [shape: f32[32,32], index: 6, kind: input, shape index: {}]
  %s7 = inlined_call_operand.vmem [shape: f32[1,32], index: 7, kind: input, shape index: {}]
  %s8 = inlined_call_operand.hbm [shape: f32[32,32], index: 8, kind: input, shape index: {}]
  %s9 = inlined_call_operand.vmem [shape: f32[1,32], index: 9, kind: input, shape index: {}]
  %s10 = inlined_call_operand.hbm [shape: f32[2,4,32], index: 10, kind: output, shape index: {}]
  %s11 = sld [smem:[#allocation0]]
  $region101: #{tpu_custom_call.1} parent=0
    _
  %s13 = ssub.s32 1, %s11
  %s14 = scalar_select 0, %s13, %s11
  $region1: #{tpu_custom_call.1} parent=0
    #allocation6 [shape = 'u8[8192]{0}', space=vmem, size = 0x2000, scoped, tag = 'input window, operand 0']
    #allocation7 [shape = 's32[2]{0}', space=sflag, size = 0x8, scoped, tag = 'scoped memory for tpu_custom_call.1']
    #allocation8 [shape = 's32[2]{0}', space=sflag, size = 0x8, scoped, tag = 'scoped memory for tpu_custom_call.1']
    #allocation9 [shape = 'u8[4096]{0}', space=vmem, size = 0x1000, scoped, tag = 'input window, operand 1']
    #allocation10 [shape = 's32[2]{0}', space=sflag, size = 0x8, scoped, tag = 'scoped memory for tpu_custom_call.1']
    #allocation11 [shape = 'u8[16384]{0}', space=vmem, size = 0x4000, scoped, tag = 'input window, operand 2, single buffered']
    #allocation12 [shape = 'u8[16384]{0}', space=vmem, size = 0x4000, scoped, tag = 'input window, operand 4, single buffered']
    #allocation13 [shape = 's32[1]{0}', space=sflag, size = 0x4, scoped, tag = 'scoped memory for tpu_custom_call.1']
    #allocation14 [shape = 'u8[16384]{0}', space=vmem, size = 0x4000, scoped, tag = 'input window, operand 6, single buffered']
    #allocation15 [shape = 'u8[16384]{0}', space=vmem, size = 0x4000, scoped, tag = 'input window, operand 8, single buffered']
    #allocation16 [shape = 's32[1]{0}', space=sflag, size = 0x4, scoped, tag = 'scoped memory for tpu_custom_call.1']
    #allocation17 [shape = 'u8[4096]{0}', space=vmem, size = 0x1000, scoped, tag = 'output window, operand 0']
    %15 = vsyncpa [#allocation7], 0
    %s16 = scalar_lea.sflag [#allocation7], 1
    %17 = vsyncpa %s16, 0
    %18 = vsyncpa [#allocation10], 0
    %s19 = scalar_lea.sflag [#allocation10], 1
    %20 = vsyncpa %s19, 0
    %21 = vsyncpa [#allocation13], 0
    %22 = vsyncpa [#allocation16], 0
    %23 = vsyncpa [#allocation8], 0
    %s24 = scalar_lea.sflag [#allocation8], 1
    %25 = vsyncpa %s24, 0
    loop: start=0, step=1, limit=4
    $region2: #{tpu_custom_call.1} parent=1 // loop_pre_header
      _
    $region3: #{tpu_custom_call.1} parent=1 // loop_header
      %s27 = sphi 0, %s31
      %p28 = scmp.ge.s32.totalorder %s27, 4
      %s34 = sphi 0, %s53
      %s35 = sphi 0, %s49
      %s36 = sphi 0, %s45
      %s37 = sphi 0, %s34
      %s38 = sphi 0, %s35
      %s39 = sphi 0, %s36
      %s40 = sphi 0, %s37
      %s41 = sphi 0, %s38
      %s42 = sphi 0, %s39
      %s56 = sphi 0, %s58
      %s59 = sphi 0, %s56
      %s60 = sphi 0, %s59
      %s76 = sphi 0, %s60
      %s86 = sphi 0, %s88
      %s89 = sphi 0, %s86
      %s90 = sphi 0, %s89
      %s106 = sphi 0, %s90
      %s110 = sphi 0, %s110
      %s112 = sphi 0, %s110
      %s113 = sphi 0, %s112
      %s127 = sphi 0, %s113
      %s131 = sphi 0, %s131
      %s133 = sphi 0, %s131
      %s134 = sphi 0, %s133
      %s148 = sphi 0, %s134
      %s152 = sphi 0, %s152
      %s154 = sphi 0, %s152
      %s155 = sphi 0, %s154
      %s169 = sphi 0, %s155
      %s173 = sphi 0, %s173
      %s175 = sphi 0, %s173
      %s176 = sphi 0, %s175
      %s190 = sphi 0, %s176
      %s194 = sphi 0, %s194
      %s196 = sphi 0, %s194
      %s197 = sphi 0, %s196
      %s211 = sphi 0, %s197
      %s215 = sphi 0, %s215
      %s217 = sphi 0, %s215
      %s218 = sphi 0, %s217
      %s232 = sphi 0, %s218
      %s236 = sphi 0, %s236
      %s238 = sphi 0, %s236
      %s239 = sphi 0, %s238
      %s253 = sphi 0, %s239
      %s257 = sphi 0, %s257
      %s259 = sphi 0, %s257
      %s260 = sphi 0, %s259
      %s274 = sphi 0, %s260
      %s284 = sphi 0, %s286
      %s287 = sphi 0, %s284
      %s288 = sphi 0, %s287
      %s304 = sphi 0, %s288
    $region4: #{tpu_custom_call.1} parent=1 // loop_header_branch
      %30 = sbr.rel (%p28) target = $region8
    $region5: #{tpu_custom_call.1} parent=1 // loop_body
      %s32 = ssub.s32 %s27, 1
      %s33 = ssub.s32 %s27, 2
      %s43 = sadd.s32 1, %s36
      %p44 = scmp.ge.s32.totalorder %s43, 1
      %s45 = scalar_select %p44, 0, %s43
      %s46 = sadd.s32 1, %s35
      %s47 = scalar_select %p44, %s46, %s35
      %p48 = scmp.ge.s32.totalorder %s47, 2
      %s49 = scalar_select %p48, 0, %s47
      %s50 = sadd.s32 1, %s34
      %s51 = scalar_select %p48, %s50, %s34
      %p52 = scmp.ge.s32.totalorder %s51, 1
      %s53 = scalar_select %p52, 0, %s51
      %s54 = ssub.s32 %s35, %s49
      %p55 = scmp.eq.s32.totalorder %s54, 0
      %s57 = sadd.s32 %s56, 1
      %s58 = scalar_select %p55, %s56, %s57
      %p61 = pneg %p55
      %p62 = scmp.eq.s32.totalorder %s27, 1
      %p63 = por %p61, %p62
      %p64 = scmp.ne.s32.totalorder %s56, %s59
      %p65 = scmp.eq.s32.totalorder %s27, 0
      %p66 = por %p64, %p65
      %p67 = scmp.ne.s32.totalorder %s56, %s59
      %p68 = scmp.eq.s32.totalorder %s32, 1
      %p69 = por %p67, %p68
      %p70 = scmp.ne.s32.totalorder %s59, %s60
      %p71 = scmp.eq.s32.totalorder %s32, 0
      %p72 = por %p70, %p71
      %p73 = scmp.ne.s32.totalorder %s59, %s60
      %p74 = scmp.eq.s32.totalorder %s33, 1
      %p75 = por %p73, %p74
      %p77 = scmp.ne.s32.totalorder %s60, %s76
      %p78 = scmp.eq.s32.totalorder %s33, 0
      %p79 = por %p77, %p78
      %s80 = sadd.s32 %s34, %s36
      %s81 = sadd.s32 %s53, %s45
      %s82 = ssub.s32 %s35, %s49
      %s83 = ssub.s32 %s80, %s81
      %s84 = sor.u32 %s82, %s83
      %p85 = scmp.eq.s32.totalorder %s84, 0
      %s87 = sadd.s32 %s86, 1
      %s88 = scalar_select %p85, %s86, %s87
      %p91 = pneg %p85
      %p92 = scmp.eq.s32.totalorder %s27, 1
      %p93 = por %p91, %p92
      %p94 = scmp.ne.s32.totalorder %s86, %s89
      %p95 = scmp.eq.s32.totalorder %s27, 0
      %p96 = por %p94, %p95
      %p97 = scmp.ne.s32.totalorder %s86, %s89
      %p98 = scmp.eq.s32.totalorder %s32, 1
      %p99 = por %p97, %p98
      %p100 = scmp.ne.s32.totalorder %s89, %s90
      %p101 = scmp.eq.s32.totalorder %s32, 0
      %p102 = por %p100, %p101
      %p103 = scmp.ne.s32.totalorder %s89, %s90
      %p104 = scmp.eq.s32.totalorder %s33, 1
      %p105 = por %p103, %p104
      %p107 = scmp.ne.s32.totalorder %s90, %s106
      %p108 = scmp.eq.s32.totalorder %s33, 0
      %p109 = por %p107, %p108
      %s111 = sadd.s32 %s110, 1
      %p114 = scmp.eq.s32.totalorder %s27, 1
      %p115 = scmp.ne.s32.totalorder %s110, %s112
      %p116 = scmp.eq.s32.totalorder %s27, 0
      %p117 = por %p115, %p116
      %p118 = scmp.ne.s32.totalorder %s110, %s112
      %p119 = scmp.eq.s32.totalorder %s32, 1
      %p120 = por %p118, %p119
      %p121 = scmp.ne.s32.totalorder %s112, %s113
      %p122 = scmp.eq.s32.totalorder %s32, 0
      %p123 = por %p121, %p122
      %p124 = scmp.ne.s32.totalorder %s112, %s113
      %p125 = scmp.eq.s32.totalorder %s33, 1
      %p126 = por %p124, %p125
      %p128 = scmp.ne.s32.totalorder %s113, %s127
      %p129 = scmp.eq.s32.totalorder %s33, 0
      %p130 = por %p128, %p129
      %s132 = sadd.s32 %s131, 1
      %p135 = scmp.eq.s32.totalorder %s27, 1
      %p136 = scmp.ne.s32.totalorder %s131, %s133
      %p137 = scmp.eq.s32.totalorder %s27, 0
      %p138 = por %p136, %p137
      %p139 = scmp.ne.s32.totalorder %s131, %s133
      %p140 = scmp.eq.s32.totalorder %s32, 1
      %p141 = por %p139, %p140
      %p142 = scmp.ne.s32.totalorder %s133, %s134
      %p143 = scmp.eq.s32.totalorder %s32, 0
      %p144 = por %p142, %p143
      %p145 = scmp.ne.s32.totalorder %s133, %s134
      %p146 = scmp.eq.s32.totalorder %s33, 1
      %p147 = por %p145, %p146
      %p149 = scmp.ne.s32.totalorder %s134, %s148
      %p150 = scmp.eq.s32.totalorder %s33, 0
      %p151 = por %p149, %p150
      %s153 = sadd.s32 %s152, 1
      %p156 = scmp.eq.s32.totalorder %s27, 1
      %p157 = scmp.ne.s32.totalorder %s152, %s154
      %p158 = scmp.eq.s32.totalorder %s27, 0
      %p159 = por %p157, %p158
      %p160 = scmp.ne.s32.totalorder %s152, %s154
      %p161 = scmp.eq.s32.totalorder %s32, 1
      %p162 = por %p160, %p161
      %p163 = scmp.ne.s32.totalorder %s154, %s155
      %p164 = scmp.eq.s32.totalorder %s32, 0
      %p165 = por %p163, %p164
      %p166 = scmp.ne.s32.totalorder %s154, %s155
      %p167 = scmp.eq.s32.totalorder %s33, 1
      %p168 = por %p166, %p167
      %p170 = scmp.ne.s32.totalorder %s155, %s169
      %p171 = scmp.eq.s32.totalorder %s33, 0
      %p172 = por %p170, %p171
      %s174 = sadd.s32 %s173, 1
      %p177 = scmp.eq.s32.totalorder %s27, 1
      %p178 = scmp.ne.s32.totalorder %s173, %s175
      %p179 = scmp.eq.s32.totalorder %s27, 0
      %p180 = por %p178, %p179
      %p181 = scmp.ne.s32.totalorder %s173, %s175
      %p182 = scmp.eq.s32.totalorder %s32, 1
      %p183 = por %p181, %p182
      %p184 = scmp.ne.s32.totalorder %s175, %s176
      %p185 = scmp.eq.s32.totalorder %s32, 0
      %p186 = por %p184, %p185
      %p187 = scmp.ne.s32.totalorder %s175, %s176
      %p188 = scmp.eq.s32.totalorder %s33, 1
      %p189 = por %p187, %p188
      %p191 = scmp.ne.s32.totalorder %s176, %s190
      %p192 = scmp.eq.s32.totalorder %s33, 0
      %p193 = por %p191, %p192
      %s195 = sadd.s32 %s194, 1
      %p198 = scmp.eq.s32.totalorder %s27, 1
      %p199 = scmp.ne.s32.totalorder %s194, %s196
      %p200 = scmp.eq.s32.totalorder %s27, 0
      %p201 = por %p199, %p200
      %p202 = scmp.ne.s32.totalorder %s194, %s196
      %p203 = scmp.eq.s32.totalorder %s32, 1
      %p204 = por %p202, %p203
      %p205 = scmp.ne.s32.totalorder %s196, %s197
      %p206 = scmp.eq.s32.totalorder %s32, 0
      %p207 = por %p205, %p206
      %p208 = scmp.ne.s32.totalorder %s196, %s197
      %p209 = scmp.eq.s32.totalorder %s33, 1
      %p210 = por %p208, %p209
      %p212 = scmp.ne.s32.totalorder %s197, %s211
      %p213 = scmp.eq.s32.totalorder %s33, 0
      %p214 = por %p212, %p213
      %s216 = sadd.s32 %s215, 1
      %p219 = scmp.eq.s32.totalorder %s27, 1
      %p220 = scmp.ne.s32.totalorder %s215, %s217
      %p221 = scmp.eq.s32.totalorder %s27, 0
      %p222 = por %p220, %p221
      %p223 = scmp.ne.s32.totalorder %s215, %s217
      %p224 = scmp.eq.s32.totalorder %s32, 1
      %p225 = por %p223, %p224
      %p226 = scmp.ne.s32.totalorder %s217, %s218
      %p227 = scmp.eq.s32.totalorder %s32, 0
      %p228 = por %p226, %p227
      %p229 = scmp.ne.s32.totalorder %s217, %s218
      %p230 = scmp.eq.s32.totalorder %s33, 1
      %p231 = por %p229, %p230
      %p233 = scmp.ne.s32.totalorder %s218, %s232
      %p234 = scmp.eq.s32.totalorder %s33, 0
      %p235 = por %p233, %p234
      %s237 = sadd.s32 %s236, 1
      %p240 = scmp.eq.s32.totalorder %s27, 1
      %p241 = scmp.ne.s32.totalorder %s236, %s238
      %p242 = scmp.eq.s32.totalorder %s27, 0
      %p243 = por %p241, %p242
      %p244 = scmp.ne.s32.totalorder %s236, %s238
      %p245 = scmp.eq.s32.totalorder %s32, 1
      %p246 = por %p244, %p245
      %p247 = scmp.ne.s32.totalorder %s238, %s239
      %p248 = scmp.eq.s32.totalorder %s32, 0
      %p249 = por %p247, %p248
      %p250 = scmp.ne.s32.totalorder %s238, %s239
      %p251 = scmp.eq.s32.totalorder %s33, 1
      %p252 = por %p250, %p251
      %p254 = scmp.ne.s32.totalorder %s239, %s253
      %p255 = scmp.eq.s32.totalorder %s33, 0
      %p256 = por %p254, %p255
      %s258 = sadd.s32 %s257, 1
      %p261 = scmp.eq.s32.totalorder %s27, 1
      %p262 = scmp.ne.s32.totalorder %s257, %s259
      %p263 = scmp.eq.s32.totalorder %s27, 0
      %p264 = por %p262, %p263
      %p265 = scmp.ne.s32.totalorder %s257, %s259
      %p266 = scmp.eq.s32.totalorder %s32, 1
      %p267 = por %p265, %p266
      %p268 = scmp.ne.s32.totalorder %s259, %s260
      %p269 = scmp.eq.s32.totalorder %s32, 0
      %p270 = por %p268, %p269
      %p271 = scmp.ne.s32.totalorder %s259, %s260
      %p272 = scmp.eq.s32.totalorder %s33, 1
      %p273 = por %p271, %p272
      %p275 = scmp.ne.s32.totalorder %s260, %s274
      %p276 = scmp.eq.s32.totalorder %s33, 0
      %p277 = por %p275, %p276
      %s278 = sadd.s32 %s34, %s36
      %s279 = sadd.s32 %s53, %s45
      %s280 = ssub.s32 %s35, %s49
      %s281 = ssub.s32 %s278, %s279
      %s282 = sor.u32 %s280, %s281
      %p283 = scmp.eq.s32.totalorder %s282, 0
      %s285 = sadd.s32 %s284, 1
      %s286 = scalar_select %p283, %s284, %s285
      %p289 = pneg %p283
      %p290 = scmp.eq.s32.totalorder %s27, 1
      %p291 = por %p289, %p290
      %p292 = scmp.ne.s32.totalorder %s284, %s287
      %p293 = scmp.eq.s32.totalorder %s27, 0
      %p294 = por %p292, %p293
      %p295 = scmp.ne.s32.totalorder %s284, %s287
      %p296 = scmp.eq.s32.totalorder %s32, 1
      %p297 = por %p295, %p296
      %p298 = scmp.ne.s32.totalorder %s287, %s288
      %p299 = scmp.eq.s32.totalorder %s32, 0
      %p300 = por %p298, %p299
      %p301 = scmp.ne.s32.totalorder %s287, %s288
      %p302 = scmp.eq.s32.totalorder %s33, 1
      %p303 = por %p301, %p302
      %p305 = scmp.ne.s32.totalorder %s288, %s304
      %p306 = scmp.eq.s32.totalorder %s33, 0
      %p307 = por %p305, %p306
      %p308 = scmp.le.s32.totalorder 1, %s27
      %p309 = scmp.lt.s32.totalorder %s27, 3
      %p310 = pnand %p308, %p309
      %p311 = pneg %p310
      // Predicated region
      $region9: #{tpu_custom_call.1} parent=5 // pred_check
        _
      $region10: #{tpu_custom_call.1} parent=5 // pred_check_branch
        %313 = sbr.rel (%p310) target = $region12
      $region11: #{tpu_custom_call.1} parent=5 // pred_region
        %s314 = ssub.s32 %s27, 1
        // Predicated region
        $region13: #{tpu_custom_call.1} parent=11 // pred_check
          %p315 = pneg %p123
        $region14: #{tpu_custom_call.1} parent=11 // pred_check_branch
          %317 = sbr.rel (%p315) target = $region16
        $region15: #{tpu_custom_call.1} parent=11 // pred_region
          %s319 = ssub.s32 512, 512
          %320 = vsyncadd [#allocation10], %s319
          %s321 = sshll.u32 [#allocation11], 4
          %s322 = int_to_ptr.vmem [resolvable:$true] %s321
          %327 = dma.hbm_to_vmem [thread:$0]  %s2, 512, %s322, [#allocation10], 128, 128, 8
        $region16: #{tpu_custom_call.1} parent=11 // pred_fallthru
          _
        // Predicated region
        $region17: #{tpu_custom_call.1} parent=11 // pred_check
          %p328 = pneg %p144
        $region18: #{tpu_custom_call.1} parent=11 // pred_check_branch
          %330 = sbr.rel (%p328) target = $region20
        $region19: #{tpu_custom_call.1} parent=11 // pred_region
          _
        $region20: #{tpu_custom_call.1} parent=11 // pred_fallthru
          _
        // Predicated region
        $region21: #{tpu_custom_call.1} parent=11 // pred_check
          %p331 = pneg %p165
        $region22: #{tpu_custom_call.1} parent=11 // pred_check_branch
          %333 = sbr.rel (%p331) target = $region24
        $region23: #{tpu_custom_call.1} parent=11 // pred_region
          %s335 = ssub.s32 512, 512
          %336 = vsyncadd [#allocation13], %s335
          %s337 = sshll.u32 [#allocation12], 4
          %s338 = int_to_ptr.vmem [resolvable:$true] %s337
          %343 = dma.hbm_to_vmem [thread:$0]  %s4, 512, %s338, [#allocation13], 128, 128, 8
        $region24: #{tpu_custom_call.1} parent=11 // pred_fallthru
          _
        // Predicated region
        $region25: #{tpu_custom_call.1} parent=11 // pred_check
          %p344 = pneg %p186
        $region26: #{tpu_custom_call.1} parent=11 // pred_check_branch
          %346 = sbr.rel (%p344) target = $region28
        $region27: #{tpu_custom_call.1} parent=11 // pred_region
          _
        $region28: #{tpu_custom_call.1} parent=11 // pred_fallthru
          _
        // Predicated region
        $region29: #{tpu_custom_call.1} parent=11 // pred_check
          %p347 = pneg %p207
        $region30: #{tpu_custom_call.1} parent=11 // pred_check_branch
          %349 = sbr.rel (%p347) target = $region32
        $region31: #{tpu_custom_call.1} parent=11 // pred_region
          %s351 = ssub.s32 512, 512
          %352 = vsyncadd [#allocation13], %s351
          %s353 = sshll.u32 [#allocation14], 4
          %s354 = int_to_ptr.vmem [resolvable:$true] %s353
          %359 = dma.hbm_to_vmem [thread:$0]  %s6, 512, %s354, [#allocation13], 128, 128, 8
        $region32: #{tpu_custom_call.1} parent=11 // pred_fallthru
          _
        // Predicated region
        $region33: #{tpu_custom_call.1} parent=11 // pred_check
          %p360 = pneg %p228
        $region34: #{tpu_custom_call.1} parent=11 // pred_check_branch
          %362 = sbr.rel (%p360) target = $region36
        $region35: #{tpu_custom_call.1} parent=11 // pred_region
          _
        $region36: #{tpu_custom_call.1} parent=11 // pred_fallthru
          _
        // Predicated region
        $region37: #{tpu_custom_call.1} parent=11 // pred_check
          %p363 = pneg %p249
        $region38: #{tpu_custom_call.1} parent=11 // pred_check_branch
          %365 = sbr.rel (%p363) target = $region40
        $region39: #{tpu_custom_call.1} parent=11 // pred_region
          %s367 = ssub.s32 512, 512
          %368 = vsyncadd [#allocation16], %s367
          %s369 = sshll.u32 [#allocation15], 4
          %s370 = int_to_ptr.vmem [resolvable:$true] %s369
          %375 = dma.hbm_to_vmem [thread:$0]  %s8, 512, %s370, [#allocation16], 128, 128, 8
        $region40: #{tpu_custom_call.1} parent=11 // pred_fallthru
          _
        // Predicated region
        $region41: #{tpu_custom_call.1} parent=11 // pred_check
          %p376 = pneg %p270
        $region42: #{tpu_custom_call.1} parent=11 // pred_check_branch
          %378 = sbr.rel (%p376) target = $region44
        $region43: #{tpu_custom_call.1} parent=11 // pred_region
          _
        $region44: #{tpu_custom_call.1} parent=11 // pred_fallthru
          _
      $region12: #{tpu_custom_call.1} parent=5 // pred_fallthru
        _
      %p379 = scmp.lt.s32.totalorder %s27, 2
      // Predicated region
      $region45: #{tpu_custom_call.1} parent=5 // pred_check
        %p380 = pneg %p379
      $region46: #{tpu_custom_call.1} parent=5 // pred_check_branch
        %382 = sbr.rel (%p380) target = $region48
      $region47: #{tpu_custom_call.1} parent=5 // pred_region
        // Predicated region
        $region49: #{tpu_custom_call.1} parent=47 // pred_check
          %p383 = pneg %p66
        $region50: #{tpu_custom_call.1} parent=47 // pred_check_branch
          %385 = sbr.rel (%p383) target = $region52
        $region51: #{tpu_custom_call.1} parent=47 // pred_region
          %s386 = sand.u32 %s56, 1
          %s387 = scalar_lea.sflag [#allocation7], %s386
          %s388 = sand.u32 %s56, 1
          %s389 = smul.addr %s388, 8
          %s390 = scalar_lea.vmem [#allocation6], %s389
          %s392 = ssub.s32 128, 128
          %393 = vsyncadd %s387, %s392
          %s394 = smul.addr %s35, 128
          %s395 = scalar_lea.hbm %s0, %s394
          %s397 = sshll.u32 %s390, 4
          %s398 = int_to_ptr.vmem [resolvable:$true] %s397
          %400 = dma.hbm_to_vmem [thread:$0]  %s395, 128, %s398, %s387
        $region52: #{tpu_custom_call.1} parent=47 // pred_fallthru
          _
        // Predicated region
        $region53: #{tpu_custom_call.1} parent=47 // pred_check
          %p401 = pneg %p96
        $region54: #{tpu_custom_call.1} parent=47 // pred_check_branch
          %403 = sbr.rel (%p401) target = $region56
        $region55: #{tpu_custom_call.1} parent=47 // pred_region
          %s404 = sand.u32 %s27, 1
          %s405 = scalar_lea.sflag [#allocation10], %s404
          %s406 = sand.u32 %s86, 1
          %s407 = smul.addr %s406, 4
          %s408 = scalar_lea.vmem [#allocation9], %s407
          %s409 = sadd.s32 %s34, %s36
          %s411 = ssub.s32 64, 64
          %412 = vsyncadd %s405, %s411
          %s413 = sadd.s32 %s409, %s35
          %s414 = smul.addr %s413, 64
          %s415 = scalar_lea.hbm %s1, %s414
          %s417 = sshll.u32 %s408, 4
          %s418 = int_to_ptr.vmem [resolvable:$true] %s417
          %420 = dma.hbm_to_vmem [thread:$0]  %s415, 64, %s418, %s405
        $region56: #{tpu_custom_call.1} parent=47 // pred_fallthru
          _
      $region48: #{tpu_custom_call.1} parent=5 // pred_fallthru
        _
      %p421 = scmp.le.s32.totalorder 1, %s27
      %p422 = scmp.lt.s32.totalorder %s27, 3
      %p423 = pnand %p421, %p422
      %p424 = pneg %p423
      // Predicated region
      $region57: #{tpu_custom_call.1} parent=5 // pred_check
        _
      $region58: #{tpu_custom_call.1} parent=5 // pred_check_branch
        %426 = sbr.rel (%p423) target = $region60
      $region59: #{tpu_custom_call.1} parent=5 // pred_region
        %s427 = ssub.s32 %s27, 1
        %s428 = sand.u32 %s59, 1
        %s429 = scalar_lea.sflag [#allocation7], %s428
        %s430 = sand.u32 %s59, 1
        %s431 = smul.addr %s430, 8
        %s432 = scalar_lea.vmem [#allocation6], %s431
        // Predicated region
        $region61: #{tpu_custom_call.1} parent=59 // pred_check
          %p433 = pneg %p72
        $region62: #{tpu_custom_call.1} parent=59 // pred_check_branch
          %435 = sbr.rel (%p433) target = $region64
        $region63: #{tpu_custom_call.1} parent=59 // pred_region
          %436 = dma.done %s429, 128
        $region64: #{tpu_custom_call.1} parent=59 // pred_fallthru
          _
        %s437 = sand.u32 %s32, 1
        %s438 = scalar_lea.sflag [#allocation10], %s437
        %s439 = sand.u32 %s89, 1
        %s440 = smul.addr %s439, 4
        %s441 = scalar_lea.vmem [#allocation9], %s440
        // Predicated region
        $region65: #{tpu_custom_call.1} parent=59 // pred_check
          %p442 = pneg %p102
        $region66: #{tpu_custom_call.1} parent=59 // pred_check_branch
          %444 = sbr.rel (%p442) target = $region68
        $region67: #{tpu_custom_call.1} parent=59 // pred_region
          %445 = dma.done %s438, 64
        $region68: #{tpu_custom_call.1} parent=59 // pred_fallthru
          _
        // Predicated region
        $region69: #{tpu_custom_call.1} parent=59 // pred_check
          %p446 = pneg %p123
        $region70: #{tpu_custom_call.1} parent=59 // pred_check_branch
          %448 = sbr.rel (%p446) target = $region72
        $region71: #{tpu_custom_call.1} parent=59 // pred_region
          %449 = dma.done [#allocation10], 512
        $region72: #{tpu_custom_call.1} parent=59 // pred_fallthru
          _
        // Predicated region
        $region73: #{tpu_custom_call.1} parent=59 // pred_check
          %p450 = pneg %p165
        $region74: #{tpu_custom_call.1} parent=59 // pred_check_branch
          %452 = sbr.rel (%p450) target = $region76
        $region75: #{tpu_custom_call.1} parent=59 // pred_region
          %453 = dma.done [#allocation13], 512
        $region76: #{tpu_custom_call.1} parent=59 // pred_fallthru
          _
        // Predicated region
        $region77: #{tpu_custom_call.1} parent=59 // pred_check
          %p454 = pneg %p207
        $region78: #{tpu_custom_call.1} parent=59 // pred_check_branch
          %456 = sbr.rel (%p454) target = $region80
        $region79: #{tpu_custom_call.1} parent=59 // pred_region
          %457 = dma.done [#allocation13], 512
        $region80: #{tpu_custom_call.1} parent=59 // pred_fallthru
          _
        // Predicated region
        $region81: #{tpu_custom_call.1} parent=59 // pred_check
          %p458 = pneg %p249
        $region82: #{tpu_custom_call.1} parent=59 // pred_check_branch
          %460 = sbr.rel (%p458) target = $region84
        $region83: #{tpu_custom_call.1} parent=59 // pred_region
          %461 = dma.done [#allocation16], 512
        $region84: #{tpu_custom_call.1} parent=59 // pred_fallthru
          _
        %s462 = sand.u32 %s59, 1
        %s463 = scalar_lea.sflag [#allocation7], %s462
        %s464 = sand.u32 %s59, 1
        %s465 = smul.addr %s464, 8
        %s466 = scalar_lea.vmem [#allocation6], %s465
        %p467 = pneg %p72
        %p468 = pneg %p69
        %s469 = sand.u32 %s32, 1
        %s470 = scalar_lea.sflag [#allocation10], %s469
        %s471 = sand.u32 %s89, 1
        %s472 = smul.addr %s471, 4
        %s473 = scalar_lea.vmem [#allocation9], %s472
        %p474 = pneg %p102
        %p475 = pneg %p99
        %p476 = pneg %p123
        %p477 = pneg %p120
        %p478 = pneg %p144
        %p479 = pneg %p141
        %p480 = pneg %p165
        %p481 = pneg %p162
        %p482 = pneg %p186
        %p483 = pneg %p183
        %p484 = pneg %p207
        %p485 = pneg %p204
        %p486 = pneg %p228
        %p487 = pneg %p225
        %p488 = pneg %p249
        %p489 = pneg %p246
        %p490 = pneg %p270
        %p491 = pneg %p267
        %p492 = pneg %p300
        %p493 = pneg %p297
        %s494 = sand.u32 %s287, 1
        %s495 = scalar_lea.sflag [#allocation8], %s494
        %s496 = sand.u32 %s287, 1
        %s497 = smul.addr %s496, 4
        %s498 = scalar_lea.vmem [#allocation17], %s497
        %s499 = sadd.s32 %s37, %s39
        %s500 = sadd.s32 %s37, %s39
        %p501 = scmp.eq.s32.totalorder %s39, 0
        // Predicated region
        $region85: #{tpu_custom_call.1} parent=59 // pred_check
          %p502 = pneg %p501
        $region86: #{tpu_custom_call.1} parent=59 // pred_check_branch
          %504 = sbr.rel (%p502) target = $region88
        $region87: #{tpu_custom_call.1} parent=59 // pred_region
          %v505 = vld [vmem:[%s432] sm:$0xff]
          %v506 = vld [vmem:[#allocation12] sm:$0xff]
          %v507 = vld [vmem:[#allocation12 + $0x8] sm:$0xff]
          %v508 = vld [vmem:[#allocation12 + $0x10] sm:$0xff]
          %v509 = vld [vmem:[#allocation12 + $0x18] sm:$0xff]
          %v510 = vld [vmem:[%s5] sm:$0x1]
          %v512 = vlaneseq
          %v513 = vshrl.u32 %v512, 7
          %v514 = vsub.s32 0, %v513
          %v515 = vrot.slane %v510, %v514
          %vm517 = vcmask 261120
          %v519 = vsel %vm517, %v505, 0
          %521 = vmatprep.subr.mxu0 0.0
          %522 = vmatpush1.msra.mxu0 %v506
          %523 = vmatprep.subr.mxu0 0.0
          %524 = vmatpush1.msra.mxu0 %v507
          %525 = vmatprep.subr.mxu0 0.0
          %526 = vmatpush1.msra.mxu0 %v508
          %527 = vmatprep.subr.mxu0 0.0
          %528 = vmatpush1.msra.mxu0 %v509
          %529 = vmatprep.subr.mxu0 0.0
          %530 = vmatpush1.msra.mxu0 0.0
          %531 = vmatprep.subr.mxu0 0.0
          %532 = vmatpush1.msra.mxu0 0.0
          %533 = vmatprep.subr.mxu0 0.0
          %534 = vmatpush1.msra.mxu0 0.0
          %535 = vmatprep.subr.mxu0 0.0
          %536 = vmatpush1.msra.mxu0 0.0
          %537 = vmatprep.subr.mxu0 0.0
          %538 = vmatpush1.msra.mxu0 0.0
          %539 = vmatprep.subr.mxu0 0.0
          %540 = vmatpush1.msra.mxu0 0.0
          %541 = vmatprep.subr.mxu0 0.0
          %542 = vmatpush1.msra.mxu0 0.0
          %543 = vmatprep.subr.mxu0 0.0
          %544 = vmatpush1.msra.mxu0 0.0
          %545 = vmatprep.subr.mxu0 0.0
          %546 = vmatpush1.msra.mxu0 0.0
          %547 = vmatprep.subr.mxu0 0.0
          %548 = vmatpush1.msra.mxu0 0.0
          %549 = vmatprep.subr.mxu0 0.0
          %550 = vmatpush1.msra.mxu0 0.0
          %551 = vmatprep.subr.mxu0 0.0
          %552 = vmatpush1.msra.mxu0 0.0
          %553 = vmatprep.subr.mxu0 0.0
          %554 = vmatpush1.msra.mxu0 0.0
          %555 = vmatprep.subr.mxu0 0.0
          %556 = vmatpush1.msra.mxu0 0.0
          %557 = vmatprep.subr.mxu0 0.0
          %558 = vmatpush1.msra.mxu0 0.0
          %559 = vmatprep.subr.mxu0 0.0
          %560 = vmatpush1.msra.mxu0 0.0
          %561 = vmatprep.subr.mxu0 0.0
          %562 = vmatpush1.msra.mxu0 0.0
          %563 = vmatprep.subr.mxu0 0.0
          %564 = vmatpush1.msra.mxu0 0.0
          %565 = vmatprep.subr.mxu0 0.0
          %566 = vmatpush1.msra.mxu0 0.0
          %567 = vmatprep.subr.mxu0 0.0
          %568 = vmatpush1.msra.mxu0 0.0
          %569 = vmatprep.subr.mxu0 0.0
          %570 = vmatpush1.msra.mxu0 0.0
          %571 = vmatprep.subr.mxu0 0.0
          %572 = vmatpush1.msra.mxu0 0.0
          %573 = vmatprep.subr.mxu0 0.0
          %574 = vmatpush1.msra.mxu0 0.0
          %575 = vmatprep.subr.mxu0 0.0
          %576 = vmatpush1.msra.mxu0 0.0
          %577 = vmatprep.subr.mxu0 0.0
          %578 = vmatpush1.msra.mxu0 0.0
          %579 = vmatprep.subr.mxu0 0.0
          %580 = vmatpush1.msra.mxu0 0.0
          %581 = vmatprep.subr.mxu0 0.0
          %582 = vmatpush1.msra.mxu0 0.0
          %583 = vmatprep.subr.mxu0 0.0
          %584 = vmatpush1.msra.mxu0 0.0
          %585 = vmatprep.mubr.f32.mxu0 0.0
          %586 = vmatmul.mubr.f32.gmra.mrb[0].mxu0 %v519
          %v587 = vpop.f32.mrb[0].mxu0
          %v588 = vadd.f32 %v515, %v587
          %v589 = vpop.f32.mrb[0].mxu0
          %590 = vdwg.mxu0
          %v591 = vld [vmem:[#allocation14] sm:$0xff]
          %v592 = vld [vmem:[#allocation14 + $0x8] sm:$0xff]
          %v593 = vld [vmem:[#allocation14 + $0x10] sm:$0xff]
          %v594 = vld [vmem:[#allocation14 + $0x18] sm:$0xff]
          %v595 = vld [vmem:[%s7] sm:$0x1]
          %v597 = vlaneseq
          %v598 = vshrl.u32 %v597, 7
          %v599 = vsub.s32 0, %v598
          %v600 = vrot.slane %v595, %v599
          %602 = vmatprep.subr.mxu0 0.0
          %603 = vmatpush1.msra.mxu0 %v591
          %604 = vmatprep.subr.mxu0 0.0
          %605 = vmatpush1.msra.mxu0 %v592
          %606 = vmatprep.subr.mxu0 0.0
          %607 = vmatpush1.msra.mxu0 %v593
          %608 = vmatprep.subr.mxu0 0.0
          %609 = vmatpush1.msra.mxu0 %v594
          %610 = vmatprep.subr.mxu0 0.0
          %611 = vmatpush1.msra.mxu0 0.0
          %612 = vmatprep.subr.mxu0 0.0
          %613 = vmatpush1.msra.mxu0 0.0
          %614 = vmatprep.subr.mxu0 0.0
          %615 = vmatpush1.msra.mxu0 0.0
          %616 = vmatprep.subr.mxu0 0.0
          %617 = vmatpush1.msra.mxu0 0.0
          %618 = vmatprep.subr.mxu0 0.0
          %619 = vmatpush1.msra.mxu0 0.0
          %620 = vmatprep.subr.mxu0 0.0
          %621 = vmatpush1.msra.mxu0 0.0
          %622 = vmatprep.subr.mxu0 0.0
          %623 = vmatpush1.msra.mxu0 0.0
          %624 = vmatprep.subr.mxu0 0.0
          %625 = vmatpush1.msra.mxu0 0.0
          %626 = vmatprep.subr.mxu0 0.0
          %627 = vmatpush1.msra.mxu0 0.0
          %628 = vmatprep.subr.mxu0 0.0
          %629 = vmatpush1.msra.mxu0 0.0
          %630 = vmatprep.subr.mxu0 0.0
          %631 = vmatpush1.msra.mxu0 0.0
          %632 = vmatprep.subr.mxu0 0.0
          %633 = vmatpush1.msra.mxu0 0.0
          %634 = vmatprep.subr.mxu0 0.0
          %635 = vmatpush1.msra.mxu0 0.0
          %636 = vmatprep.subr.mxu0 0.0
          %637 = vmatpush1.msra.mxu0 0.0
          %638 = vmatprep.subr.mxu0 0.0
          %639 = vmatpush1.msra.mxu0 0.0
          %640 = vmatprep.subr.mxu0 0.0
          %641 = vmatpush1.msra.mxu0 0.0
          %642 = vmatprep.subr.mxu0 0.0
          %643 = vmatpush1.msra.mxu0 0.0
          %644 = vmatprep.subr.mxu0 0.0
          %645 = vmatpush1.msra.mxu0 0.0
          %646 = vmatprep.subr.mxu0 0.0
          %647 = vmatpush1.msra.mxu0 0.0
          %648 = vmatprep.subr.mxu0 0.0
          %649 = vmatpush1.msra.mxu0 0.0
          %650 = vmatprep.subr.mxu0 0.0
          %651 = vmatpush1.msra.mxu0 0.0
          %652 = vmatprep.subr.mxu0 0.0
          %653 = vmatpush1.msra.mxu0 0.0
          %654 = vmatprep.subr.mxu0 0.0
          %655 = vmatpush1.msra.mxu0 0.0
          %656 = vmatprep.subr.mxu0 0.0
          %657 = vmatpush1.msra.mxu0 0.0
          %658 = vmatprep.subr.mxu0 0.0
          %659 = vmatpush1.msra.mxu0 0.0
          %660 = vmatprep.subr.mxu0 0.0
          %661 = vmatpush1.msra.mxu0 0.0
          %662 = vmatprep.subr.mxu0 0.0
          %663 = vmatpush1.msra.mxu0 0.0
          %664 = vmatprep.subr.mxu0 0.0
          %665 = vmatpush1.msra.mxu0 0.0
          %666 = vmatprep.mubr.f32.mxu0 0.0
          %667 = vmatmul.mubr.f32.gmra.mrb[0].mxu0 %v519
          %v668 = vpop.f32.mrb[0].mxu0
          %v669 = vadd.f32 %v600, %v668
          %v670 = vpop.f32.mrb[0].mxu0
          %671 = vdwg.mxu0
          %672 = vst.msk [vmem:[#allocation2] sm:$0xff] %vm517, %v588
          %673 = vst.msk [vmem:[#allocation3] sm:$0xff] %vm517, %v669
        $region88: #{tpu_custom_call.1} parent=59 // pred_fallthru
          _
        %v674 = vld [vmem:[%s441] sm:$0xf]
        %v675 = vld [vmem:[#allocation11] sm:$0xff]
        %v676 = vld [vmem:[#allocation11 + $0x8] sm:$0xff]
        %v677 = vld [vmem:[#allocation11 + $0x10] sm:$0xff]
        %v678 = vld [vmem:[#allocation11 + $0x18] sm:$0xff]
        %v679 = vld [vmem:[%s3] sm:$0x1]
        %v681 = vlaneseq
        %v682 = vshrl.u32 %v681, 7
        %v683 = vsub.s32 0, %v682
        %v684 = vrot.slane %v679, %v683
        %vm686 = vcmask 261120
        %v688 = vsel %vm686, %v674, 0
        %690 = vmatprep.subr.mxu0 0.0
        %691 = vmatpush1.msra.mxu0 %v675
        %692 = vmatprep.subr.mxu0 0.0
        %693 = vmatpush1.msra.mxu0 %v676
        %694 = vmatprep.subr.mxu0 0.0
        %695 = vmatpush1.msra.mxu0 %v677
        %696 = vmatprep.subr.mxu0 0.0
        %697 = vmatpush1.msra.mxu0 %v678
        %698 = vmatprep.subr.mxu0 0.0
        %699 = vmatpush1.msra.mxu0 0.0
        %700 = vmatprep.subr.mxu0 0.0
        %701 = vmatpush1.msra.mxu0 0.0
        %702 = vmatprep.subr.mxu0 0.0
        %703 = vmatpush1.msra.mxu0 0.0
        %704 = vmatprep.subr.mxu0 0.0
        %705 = vmatpush1.msra.mxu0 0.0
        %706 = vmatprep.subr.mxu0 0.0
        %707 = vmatpush1.msra.mxu0 0.0
        %708 = vmatprep.subr.mxu0 0.0
        %709 = vmatpush1.msra.mxu0 0.0
        %710 = vmatprep.subr.mxu0 0.0
        %711 = vmatpush1.msra.mxu0 0.0
        %712 = vmatprep.subr.mxu0 0.0
        %713 = vmatpush1.msra.mxu0 0.0
        %714 = vmatprep.subr.mxu0 0.0
        %715 = vmatpush1.msra.mxu0 0.0
        %716 = vmatprep.subr.mxu0 0.0
        %717 = vmatpush1.msra.mxu0 0.0
        %718 = vmatprep.subr.mxu0 0.0
        %719 = vmatpush1.msra.mxu0 0.0
        %720 = vmatprep.subr.mxu0 0.0
        %721 = vmatpush1.msra.mxu0 0.0
        %722 = vmatprep.subr.mxu0 0.0
        %723 = vmatpush1.msra.mxu0 0.0
        %724 = vmatprep.subr.mxu0 0.0
        %725 = vmatpush1.msra.mxu0 0.0
        %726 = vmatprep.subr.mxu0 0.0
        %727 = vmatpush1.msra.mxu0 0.0
        %728 = vmatprep.subr.mxu0 0.0
        %729 = vmatpush1.msra.mxu0 0.0
        %730 = vmatprep.subr.mxu0 0.0
        %731 = vmatpush1.msra.mxu0 0.0
        %732 = vmatprep.subr.mxu0 0.0
        %733 = vmatpush1.msra.mxu0 0.0
        %734 = vmatprep.subr.mxu0 0.0
        %735 = vmatpush1.msra.mxu0 0.0
        %736 = vmatprep.subr.mxu0 0.0
        %737 = vmatpush1.msra.mxu0 0.0
        %738 = vmatprep.subr.mxu0 0.0
        %739 = vmatpush1.msra.mxu0 0.0
        %740 = vmatprep.subr.mxu0 0.0
        %741 = vmatpush1.msra.mxu0 0.0
        %742 = vmatprep.subr.mxu0 0.0
        %743 = vmatpush1.msra.mxu0 0.0
        %744 = vmatprep.subr.mxu0 0.0
        %745 = vmatpush1.msra.mxu0 0.0
        %746 = vmatprep.subr.mxu0 0.0
        %747 = vmatpush1.msra.mxu0 0.0
        %748 = vmatprep.subr.mxu0 0.0
        %749 = vmatpush1.msra.mxu0 0.0
        %750 = vmatprep.subr.mxu0 0.0
        %751 = vmatpush1.msra.mxu0 0.0
        %752 = vmatprep.subr.mxu0 0.0
        %753 = vmatpush1.msra.mxu0 0.0
        %754 = vmatprep.mubr.f32.mxu0 0.0
        %755 = vmatmul.mubr.f32.gmra.mrb[0].mxu0 %v688
        %v756 = vpop.f32.mrb[0].mxu0
        %v757 = vadd.f32 %v684, %v756
        %v758 = vpop.f32.mrb[0].mxu0
        %759 = vdwg.mxu0
        %v760 = vmul.f32 %v757, 0.35355338
        %vm761 = vcmask 257024
        %762 = vst.msk [vmem:[#allocation4] sm:$0xf] %vm761, %v760
        %763 = vst.msk [vmem:[#allocation5] sm:$0xf] %vm761, 0.0
        %v764 = vld [vmem:[#allocation4] sm:$0xf]
        %v765 = vld [vmem:[#allocation2] sm:$0xff]
        %v766 = vld [vmem:[#allocation3] sm:$0xff]
        %vm767 = vcmask 64512
        %v769 = vsel %vm767, %v764, 0
        %v772 = vsel %vm767, %v765, 0
        %774 = vmatprep.subr.mxu0 0.0
        %775 = vmatpush1.xpose.msra.mxu0 %v772
        %776 = vmatprep.subr.mxu0 0.0
        %777 = vmatpush1.xpose.msra.mxu0 0.0
        %778 = vmatprep.subr.mxu0 0.0
        %779 = vmatpush1.xpose.msra.mxu0 0.0
        %780 = vmatprep.subr.mxu0 0.0
        %781 = vmatpush1.xpose.msra.mxu0 0.0
        %782 = vmatprep.subr.mxu0 0.0
        %783 = vmatpush1.xpose.msra.mxu0 0.0
        %784 = vmatprep.subr.mxu0 0.0
        %785 = vmatpush1.xpose.msra.mxu0 0.0
        %786 = vmatprep.subr.mxu0 0.0
        %787 = vmatpush1.xpose.msra.mxu0 0.0
        %788 = vmatprep.subr.mxu0 0.0
        %789 = vmatpush1.xpose.msra.mxu0 0.0
        %790 = vmatprep.subr.mxu0 0.0
        %791 = vmatpush1.xpose.msra.mxu0 0.0
        %792 = vmatprep.subr.mxu0 0.0
        %793 = vmatpush1.xpose.msra.mxu0 0.0
        %794 = vmatprep.subr.mxu0 0.0
        %795 = vmatpush1.xpose.msra.mxu0 0.0
        %796 = vmatprep.subr.mxu0 0.0
        %797 = vmatpush1.xpose.msra.mxu0 0.0
        %798 = vmatprep.subr.mxu0 0.0
        %799 = vmatpush1.xpose.msra.mxu0 0.0
        %800 = vmatprep.subr.mxu0 0.0
        %801 = vmatpush1.xpose.msra.mxu0 0.0
        %802 = vmatprep.subr.mxu0 0.0
        %803 = vmatpush1.xpose.msra.mxu0 0.0
        %804 = vmatprep.subr.mxu0 0.0
        %805 = vmatpush1.xpose.msra.mxu0 0.0
        %806 = vmatprep.subr.mxu0 0.0
        %807 = vmatpush1.xpose.msra.mxu0 0.0
        %808 = vmatprep.subr.mxu0 0.0
        %809 = vmatpush1.xpose.msra.mxu0 0.0
        %810 = vmatprep.subr.mxu0 0.0
        %811 = vmatpush1.xpose.msra.mxu0 0.0
        %812 = vmatprep.subr.mxu0 0.0
        %813 = vmatpush1.xpose.msra.mxu0 0.0
        %814 = vmatprep.subr.mxu0 0.0
        %815 = vmatpush1.xpose.msra.mxu0 0.0
        %816 = vmatprep.subr.mxu0 0.0
        %817 = vmatpush1.xpose.msra.mxu0 0.0
        %818 = vmatprep.subr.mxu0 0.0
        %819 = vmatpush1.xpose.msra.mxu0 0.0
        %820 = vmatprep.subr.mxu0 0.0
        %821 = vmatpush1.xpose.msra.mxu0 0.0
        %822 = vmatprep.subr.mxu0 0.0
        %823 = vmatpush1.xpose.msra.mxu0 0.0
        %824 = vmatprep.subr.mxu0 0.0
        %825 = vmatpush1.xpose.msra.mxu0 0.0
        %826 = vmatprep.subr.mxu0 0.0
        %827 = vmatpush1.xpose.msra.mxu0 0.0
        %828 = vmatprep.subr.mxu0 0.0
        %829 = vmatpush1.xpose.msra.mxu0 0.0
        %830 = vmatprep.subr.mxu0 0.0
        %831 = vmatpush1.xpose.msra.mxu0 0.0
        %832 = vmatprep.subr.mxu0 0.0
        %833 = vmatpush1.xpose.msra.mxu0 0.0
        %834 = vmatprep.subr.mxu0 0.0
        %835 = vmatpush1.xpose.msra.mxu0 0.0
        %836 = vmatprep.subr.mxu0 0.0
        %837 = vmatpush1.xpose.msra.mxu0 0.0
        %838 = vmatprep.mubr.f32.mxu0 0.0
        %839 = vmatmul.mubr.f32.gmra.mrb[0].mxu0 %v769
        %v840 = vpop.f32.mrb[0].mxu0
        %v841 = vadd.f32 0.0, %v840
        %v842 = vpop.f32.mrb[0].mxu0
        %843 = vdwg.mxu0
        %vm844 = vcmask 60416
        %v845 = vsel %vm844, %v841, -inf
        %846 = vmax.xlane.f32.xlu0 %v845
        %v847 = vpop.xlane.xlu0 %846
        %v848 = vsub.f32 %v841, %v847
        %v849 = vmul.f32 %v848, 1.442695
        %v850 = vpow.pop %v849
        %v851 = vsel %vm844, %v850, 0.0
        %852 = vadd.xlane.f32.xlu0 %v851
        %v853 = vpop.xlane.xlu0 %852
        %v854 = vrcp.pop %v853
        %v855 = vmul.f32 %v850, %v854
        %v857 = vsel %vm767, %v855, 0
        %859 = vmatprep.subr.mxu0 0.0
        %860 = vmatpush1.msra.mxu0 %v766
        %861 = vmatprep.subr.mxu0 0.0
        %862 = vmatpush1.msra.mxu0 0.0
        %863 = vmatprep.subr.mxu0 0.0
        %864 = vmatpush1.msra.mxu0 0.0
        %865 = vmatprep.subr.mxu0 0.0
        %866 = vmatpush1.msra.mxu0 0.0
        %867 = vmatprep.subr.mxu0 0.0
        %868 = vmatpush1.msra.mxu0 0.0
        %869 = vmatprep.subr.mxu0 0.0
        %870 = vmatpush1.msra.mxu0 0.0
        %871 = vmatprep.subr.mxu0 0.0
        %872 = vmatpush1.msra.mxu0 0.0
        %873 = vmatprep.subr.mxu0 0.0
        %874 = vmatpush1.msra.mxu0 0.0
        %875 = vmatprep.subr.mxu0 0.0
        %876 = vmatpush1.msra.mxu0 0.0
        %877 = vmatprep.subr.mxu0 0.0
        %878 = vmatpush1.msra.mxu0 0.0
        %879 = vmatprep.subr.mxu0 0.0
        %880 = vmatpush1.msra.mxu0 0.0
        %881 = vmatprep.subr.mxu0 0.0
        %882 = vmatpush1.msra.mxu0 0.0
        %883 = vmatprep.subr.mxu0 0.0
        %884 = vmatpush1.msra.mxu0 0.0
        %885 = vmatprep.subr.mxu0 0.0
        %886 = vmatpush1.msra.mxu0 0.0
        %887 = vmatprep.subr.mxu0 0.0
        %888 = vmatpush1.msra.mxu0 0.0
        %889 = vmatprep.subr.mxu0 0.0
        %890 = vmatpush1.msra.mxu0 0.0
        %891 = vmatprep.subr.mxu0 0.0
        %892 = vmatpush1.msra.mxu0 0.0
        %893 = vmatprep.subr.mxu0 0.0
        %894 = vmatpush1.msra.mxu0 0.0
        %895 = vmatprep.subr.mxu0 0.0
        %896 = vmatpush1.msra.mxu0 0.0
        %897 = vmatprep.subr.mxu0 0.0
        %898 = vmatpush1.msra.mxu0 0.0
        %899 = vmatprep.subr.mxu0 0.0
        %900 = vmatpush1.msra.mxu0 0.0
        %901 = vmatprep.subr.mxu0 0.0
        %902 = vmatpush1.msra.mxu0 0.0
        %903 = vmatprep.subr.mxu0 0.0
        %904 = vmatpush1.msra.mxu0 0.0
        %905 = vmatprep.subr.mxu0 0.0
        %906 = vmatpush1.msra.mxu0 0.0
        %907 = vmatprep.subr.mxu0 0.0
        %908 = vmatpush1.msra.mxu0 0.0
        %909 = vmatprep.subr.mxu0 0.0
        %910 = vmatpush1.msra.mxu0 0.0
        %911 = vmatprep.subr.mxu0 0.0
        %912 = vmatpush1.msra.mxu0 0.0
        %913 = vmatprep.subr.mxu0 0.0
        %914 = vmatpush1.msra.mxu0 0.0
        %915 = vmatprep.subr.mxu0 0.0
        %916 = vmatpush1.msra.mxu0 0.0
        %917 = vmatprep.subr.mxu0 0.0
        %918 = vmatpush1.msra.mxu0 0.0
        %919 = vmatprep.subr.mxu0 0.0
        %920 = vmatpush1.msra.mxu0 0.0
        %921 = vmatprep.subr.mxu0 0.0
        %922 = vmatpush1.msra.mxu0 0.0
        %923 = vmatprep.mubr.f32.mxu0 0.0
        %924 = vmatmul.mubr.f32.gmra.mrb[0].mxu0 %v857
        %v925 = vpop.f32.mrb[0].mxu0
        %v926 = vadd.f32 0.0, %v925
        %v927 = vpop.f32.mrb[0].mxu0
        %928 = vdwg.mxu0
        %v929 = vld [vmem:[#allocation5] sm:$0xf]
        %v930 = vld [vmem:[#allocation15] sm:$0xff]
        %v932 = vsel %vm767, %v926, 0
        %934 = vmatprep.subr.mxu0 0.0
        %935 = vmatpush1.msra.mxu0 %v930
        %936 = vmatprep.subr.mxu0 0.0
        %937 = vmatpush1.msra.mxu0 0.0
        %938 = vmatprep.subr.mxu0 0.0
        %939 = vmatpush1.msra.mxu0 0.0
        %940 = vmatprep.subr.mxu0 0.0
        %941 = vmatpush1.msra.mxu0 0.0
        %942 = vmatprep.subr.mxu0 0.0
        %943 = vmatpush1.msra.mxu0 0.0
        %944 = vmatprep.subr.mxu0 0.0
        %945 = vmatpush1.msra.mxu0 0.0
        %946 = vmatprep.subr.mxu0 0.0
        %947 = vmatpush1.msra.mxu0 0.0
        %948 = vmatprep.subr.mxu0 0.0
        %949 = vmatpush1.msra.mxu0 0.0
        %950 = vmatprep.subr.mxu0 0.0
        %951 = vmatpush1.msra.mxu0 0.0
        %952 = vmatprep.subr.mxu0 0.0
        %953 = vmatpush1.msra.mxu0 0.0
        %954 = vmatprep.subr.mxu0 0.0
        %955 = vmatpush1.msra.mxu0 0.0
        %956 = vmatprep.subr.mxu0 0.0
        %957 = vmatpush1.msra.mxu0 0.0
        %958 = vmatprep.subr.mxu0 0.0
        %959 = vmatpush1.msra.mxu0 0.0
        %960 = vmatprep.subr.mxu0 0.0
        %961 = vmatpush1.msra.mxu0 0.0
        %962 = vmatprep.subr.mxu0 0.0
        %963 = vmatpush1.msra.mxu0 0.0
        %964 = vmatprep.subr.mxu0 0.0
        %965 = vmatpush1.msra.mxu0 0.0
        %966 = vmatprep.subr.mxu0 0.0
        %967 = vmatpush1.msra.mxu0 0.0
        %968 = vmatprep.subr.mxu0 0.0
        %969 = vmatpush1.msra.mxu0 0.0
        %970 = vmatprep.subr.mxu0 0.0
        %971 = vmatpush1.msra.mxu0 0.0
        %972 = vmatprep.subr.mxu0 0.0
        %973 = vmatpush1.msra.mxu0 0.0
        %974 = vmatprep.subr.mxu0 0.0
        %975 = vmatpush1.msra.mxu0 0.0
        %976 = vmatprep.subr.mxu0 0.0
        %977 = vmatpush1.msra.mxu0 0.0
        %978 = vmatprep.subr.mxu0 0.0
        %979 = vmatpush1.msra.mxu0 0.0
        %980 = vmatprep.subr.mxu0 0.0
        %981 = vmatpush1.msra.mxu0 0.0
        %982 = vmatprep.subr.mxu0 0.0
        %983 = vmatpush1.msra.mxu0 0.0
        %984 = vmatprep.subr.mxu0 0.0
        %985 = vmatpush1.msra.mxu0 0.0
        %986 = vmatprep.subr.mxu0 0.0
        %987 = vmatpush1.msra.mxu0 0.0
        %988 = vmatprep.subr.mxu0 0.0
        %989 = vmatpush1.msra.mxu0 0.0
        %990 = vmatprep.subr.mxu0 0.0
        %991 = vmatpush1.msra.mxu0 0.0
        %992 = vmatprep.subr.mxu0 0.0
        %993 = vmatpush1.msra.mxu0 0.0
        %994 = vmatprep.subr.mxu0 0.0
        %995 = vmatpush1.msra.mxu0 0.0
        %996 = vmatprep.subr.mxu0 0.0
        %997 = vmatpush1.msra.mxu0 0.0
        %998 = vmatprep.mubr.f32.mxu0 0.0
        %999 = vmatmul.mubr.f32.gmra.mrb[0].mxu0 %v932
        %v1000 = vpop.f32.mrb[0].mxu0
        %v1001 = vadd.f32 0.0, %v1000
        %v1002 = vpop.f32.mrb[0].mxu0
        %1003 = vdwg.mxu0
        %v1004 = vadd.f32 %v929, %v1001
        %1005 = vst.msk [vmem:[#allocation5] sm:$0xf] %vm761, %v1004
        %v1006 = vld [vmem:[#allocation4] sm:$0xf]
        %v1007 = vld [vmem:[#allocation2] sm:$0xff]
        %v1008 = vld [vmem:[#allocation3] sm:$0xff]
        %1010 = vrot.lane.b32.xlu0 %v1006, 120
        %v1011 = vpop.permute.xlu0 %1010
        %1013 = vrot.lane.b32.xlu0 %v1007, 120
        %v1014 = vpop.permute.xlu0 %1013
        %v1015 = vsel %vm767, %v1011, 0
        %v1017 = vsel %vm767, %v1014, 0
        %1019 = vmatprep.subr.mxu0 0.0
        %1020 = vmatpush1.xpose.msra.mxu0 %v1017
        %1021 = vmatprep.subr.mxu0 0.0
        %1022 = vmatpush1.xpose.msra.mxu0 0.0
        %1023 = vmatprep.subr.mxu0 0.0
        %1024 = vmatpush1.xpose.msra.mxu0 0.0
        %1025 = vmatprep.subr.mxu0 0.0
        %1026 = vmatpush1.xpose.msra.mxu0 0.0
        %1027 = vmatprep.subr.mxu0 0.0
        %1028 = vmatpush1.xpose.msra.mxu0 0.0
        %1029 = vmatprep.subr.mxu0 0.0
        %1030 = vmatpush1.xpose.msra.mxu0 0.0
        %1031 = vmatprep.subr.mxu0 0.0
        %1032 = vmatpush1.xpose.msra.mxu0 0.0
        %1033 = vmatprep.subr.mxu0 0.0
        %1034 = vmatpush1.xpose.msra.mxu0 0.0
        %1035 = vmatprep.subr.mxu0 0.0
        %1036 = vmatpush1.xpose.msra.mxu0 0.0
        %1037 = vmatprep.subr.mxu0 0.0
        %1038 = vmatpush1.xpose.msra.mxu0 0.0
        %1039 = vmatprep.subr.mxu0 0.0
        %1040 = vmatpush1.xpose.msra.mxu0 0.0
        %1041 = vmatprep.subr.mxu0 0.0
        %1042 = vmatpush1.xpose.msra.mxu0 0.0
        %1043 = vmatprep.subr.mxu0 0.0
        %1044 = vmatpush1.xpose.msra.mxu0 0.0
        %1045 = vmatprep.subr.mxu0 0.0
        %1046 = vmatpush1.xpose.msra.mxu0 0.0
        %1047 = vmatprep.subr.mxu0 0.0
        %1048 = vmatpush1.xpose.msra.mxu0 0.0
        %1049 = vmatprep.subr.mxu0 0.0
        %1050 = vmatpush1.xpose.msra.mxu0 0.0
        %1051 = vmatprep.subr.mxu0 0.0
        %1052 = vmatpush1.xpose.msra.mxu0 0.0
        %1053 = vmatprep.subr.mxu0 0.0
        %1054 = vmatpush1.xpose.msra.mxu0 0.0
        %1055 = vmatprep.subr.mxu0 0.0
        %1056 = vmatpush1.xpose.msra.mxu0 0.0
        %1057 = vmatprep.subr.mxu0 0.0
        %1058 = vmatpush1.xpose.msra.mxu0 0.0
        %1059 = vmatprep.subr.mxu0 0.0
        %1060 = vmatpush1.xpose.msra.mxu0 0.0
        %1061 = vmatprep.subr.mxu0 0.0
        %1062 = vmatpush1.xpose.msra.mxu0 0.0
        %1063 = vmatprep.subr.mxu0 0.0
        %1064 = vmatpush1.xpose.msra.mxu0 0.0
        %1065 = vmatprep.subr.mxu0 0.0
        %1066 = vmatpush1.xpose.msra.mxu0 0.0
        %1067 = vmatprep.subr.mxu0 0.0
        %1068 = vmatpush1.xpose.msra.mxu0 0.0
        %1069 = vmatprep.subr.mxu0 0.0
        %1070 = vmatpush1.xpose.msra.mxu0 0.0
        %1071 = vmatprep.subr.mxu0 0.0
        %1072 = vmatpush1.xpose.msra.mxu0 0.0
        %1073 = vmatprep.subr.mxu0 0.0
        %1074 = vmatpush1.xpose.msra.mxu0 0.0
        %1075 = vmatprep.subr.mxu0 0.0
        %1076 = vmatpush1.xpose.msra.mxu0 0.0
        %1077 = vmatprep.subr.mxu0 0.0
        %1078 = vmatpush1.xpose.msra.mxu0 0.0
        %1079 = vmatprep.subr.mxu0 0.0
        %1080 = vmatpush1.xpose.msra.mxu0 0.0
        %1081 = vmatprep.subr.mxu0 0.0
        %1082 = vmatpush1.xpose.msra.mxu0 0.0
        %1083 = vmatprep.mubr.f32.mxu0 0.0
        %1084 = vmatmul.mubr.f32.gmra.mrb[0].mxu0 %v1015
        %v1085 = vpop.f32.mrb[0].mxu0
        %v1086 = vadd.f32 0.0, %v1085
        %v1087 = vpop.f32.mrb[0].mxu0
        %1088 = vdwg.mxu0
        %v1089 = vsel %vm844, %v1086, -inf
        %1090 = vmax.xlane.f32.xlu0 %v1089
        %v1091 = vpop.xlane.xlu0 %1090
        %v1092 = vsub.f32 %v1086, %v1091
        %v1093 = vmul.f32 %v1092, 1.442695
        %v1094 = vpow.pop %v1093
        %v1095 = vsel %vm844, %v1094, 0.0
        %1096 = vadd.xlane.f32.xlu0 %v1095
        %v1097 = vpop.xlane.xlu0 %1096
        %v1098 = vrcp.pop %v1097
        %v1099 = vmul.f32 %v1094, %v1098
        %1101 = vrot.lane.b32.xlu0 %v1008, 120
        %v1102 = vpop.permute.xlu0 %1101
        %v1105 = vsel %vm767, %v1099, 0
        %1107 = vmatprep.subr.mxu0 0.0
        %1108 = vmatpush1.msra.mxu0 %v1102
        %1109 = vmatprep.subr.mxu0 0.0
        %1110 = vmatpush1.msra.mxu0 0.0
        %1111 = vmatprep.subr.mxu0 0.0
        %1112 = vmatpush1.msra.mxu0 0.0
        %1113 = vmatprep.subr.mxu0 0.0
        %1114 = vmatpush1.msra.mxu0 0.0
        %1115 = vmatprep.subr.mxu0 0.0
        %1116 = vmatpush1.msra.mxu0 0.0
        %1117 = vmatprep.subr.mxu0 0.0
        %1118 = vmatpush1.msra.mxu0 0.0
        %1119 = vmatprep.subr.mxu0 0.0
        %1120 = vmatpush1.msra.mxu0 0.0
        %1121 = vmatprep.subr.mxu0 0.0
        %1122 = vmatpush1.msra.mxu0 0.0
        %1123 = vmatprep.subr.mxu0 0.0
        %1124 = vmatpush1.msra.mxu0 0.0
        %1125 = vmatprep.subr.mxu0 0.0
        %1126 = vmatpush1.msra.mxu0 0.0
        %1127 = vmatprep.subr.mxu0 0.0
        %1128 = vmatpush1.msra.mxu0 0.0
        %1129 = vmatprep.subr.mxu0 0.0
        %1130 = vmatpush1.msra.mxu0 0.0
        %1131 = vmatprep.subr.mxu0 0.0
        %1132 = vmatpush1.msra.mxu0 0.0
        %1133 = vmatprep.subr.mxu0 0.0
        %1134 = vmatpush1.msra.mxu0 0.0
        %1135 = vmatprep.subr.mxu0 0.0
        %1136 = vmatpush1.msra.mxu0 0.0
        %1137 = vmatprep.subr.mxu0 0.0
        %1138 = vmatpush1.msra.mxu0 0.0
        %1139 = vmatprep.subr.mxu0 0.0
        %1140 = vmatpush1.msra.mxu0 0.0
        %1141 = vmatprep.subr.mxu0 0.0
        %1142 = vmatpush1.msra.mxu0 0.0
        %1143 = vmatprep.subr.mxu0 0.0
        %1144 = vmatpush1.msra.mxu0 0.0
        %1145 = vmatprep.subr.mxu0 0.0
        %1146 = vmatpush1.msra.mxu0 0.0
        %1147 = vmatprep.subr.mxu0 0.0
        %1148 = vmatpush1.msra.mxu0 0.0
        %1149 = vmatprep.subr.mxu0 0.0
        %1150 = vmatpush1.msra.mxu0 0.0
        %1151 = vmatprep.subr.mxu0 0.0
        %1152 = vmatpush1.msra.mxu0 0.0
        %1153 = vmatprep.subr.mxu0 0.0
        %1154 = vmatpush1.msra.mxu0 0.0
        %1155 = vmatprep.subr.mxu0 0.0
        %1156 = vmatpush1.msra.mxu0 0.0
        %1157 = vmatprep.subr.mxu0 0.0
        %1158 = vmatpush1.msra.mxu0 0.0
        %1159 = vmatprep.subr.mxu0 0.0
        %1160 = vmatpush1.msra.mxu0 0.0
        %1161 = vmatprep.subr.mxu0 0.0
        %1162 = vmatpush1.msra.mxu0 0.0
        %1163 = vmatprep.subr.mxu0 0.0
        %1164 = vmatpush1.msra.mxu0 0.0
        %1165 = vmatprep.subr.mxu0 0.0
        %1166 = vmatpush1.msra.mxu0 0.0
        %1167 = vmatprep.subr.mxu0 0.0
        %1168 = vmatpush1.msra.mxu0 0.0
        %1169 = vmatprep.subr.mxu0 0.0
        %1170 = vmatpush1.msra.mxu0 0.0
        %1171 = vmatprep.mubr.f32.mxu0 0.0
        %1172 = vmatmul.mubr.f32.gmra.mrb[0].mxu0 %v1105
        %v1173 = vpop.f32.mrb[0].mxu0
        %v1174 = vadd.f32 0.0, %v1173
        %v1175 = vpop.f32.mrb[0].mxu0
        %1176 = vdwg.mxu0
        %v1177 = vld [vmem:[#allocation5] sm:$0xf]
        %v1178 = vld [vmem:[#allocation15 + $0x8] sm:$0xff]
        %v1180 = vsel %vm767, %v1174, 0
        %1182 = vmatprep.subr.mxu0 0.0
        %1183 = vmatpush1.msra.mxu0 %v1178
        %1184 = vmatprep.subr.mxu0 0.0
        %1185 = vmatpush1.msra.mxu0 0.0
        %1186 = vmatprep.subr.mxu0 0.0
        %1187 = vmatpush1.msra.mxu0 0.0
        %1188 = vmatprep.subr.mxu0 0.0
        %1189 = vmatpush1.msra.mxu0 0.0
        %1190 = vmatprep.subr.mxu0 0.0
        %1191 = vmatpush1.msra.mxu0 0.0
        %1192 = vmatprep.subr.mxu0 0.0
        %1193 = vmatpush1.msra.mxu0 0.0
        %1194 = vmatprep.subr.mxu0 0.0
        %1195 = vmatpush1.msra.mxu0 0.0
        %1196 = vmatprep.subr.mxu0 0.0
        %1197 = vmatpush1.msra.mxu0 0.0
        %1198 = vmatprep.subr.mxu0 0.0
        %1199 = vmatpush1.msra.mxu0 0.0
        %1200 = vmatprep.subr.mxu0 0.0
        %1201 = vmatpush1.msra.mxu0 0.0
        %1202 = vmatprep.subr.mxu0 0.0
        %1203 = vmatpush1.msra.mxu0 0.0
        %1204 = vmatprep.subr.mxu0 0.0
        %1205 = vmatpush1.msra.mxu0 0.0
        %1206 = vmatprep.subr.mxu0 0.0
        %1207 = vmatpush1.msra.mxu0 0.0
        %1208 = vmatprep.subr.mxu0 0.0
        %1209 = vmatpush1.msra.mxu0 0.0
        %1210 = vmatprep.subr.mxu0 0.0
        %1211 = vmatpush1.msra.mxu0 0.0
        %1212 = vmatprep.subr.mxu0 0.0
        %1213 = vmatpush1.msra.mxu0 0.0
        %1214 = vmatprep.subr.mxu0 0.0
        %1215 = vmatpush1.msra.mxu0 0.0
        %1216 = vmatprep.subr.mxu0 0.0
        %1217 = vmatpush1.msra.mxu0 0.0
        %1218 = vmatprep.subr.mxu0 0.0
        %1219 = vmatpush1.msra.mxu0 0.0
        %1220 = vmatprep.subr.mxu0 0.0
        %1221 = vmatpush1.msra.mxu0 0.0
        %1222 = vmatprep.subr.mxu0 0.0
        %1223 = vmatpush1.msra.mxu0 0.0
        %1224 = vmatprep.subr.mxu0 0.0
        %1225 = vmatpush1.msra.mxu0 0.0
        %1226 = vmatprep.subr.mxu0 0.0
        %1227 = vmatpush1.msra.mxu0 0.0
        %1228 = vmatprep.subr.mxu0 0.0
        %1229 = vmatpush1.msra.mxu0 0.0
        %1230 = vmatprep.subr.mxu0 0.0
        %1231 = vmatpush1.msra.mxu0 0.0
        %1232 = vmatprep.subr.mxu0 0.0
        %1233 = vmatpush1.msra.mxu0 0.0
        %1234 = vmatprep.subr.mxu0 0.0
        %1235 = vmatpush1.msra.mxu0 0.0
        %1236 = vmatprep.subr.mxu0 0.0
        %1237 = vmatpush1.msra.mxu0 0.0
        %1238 = vmatprep.subr.mxu0 0.0
        %1239 = vmatpush1.msra.mxu0 0.0
        %1240 = vmatprep.subr.mxu0 0.0
        %1241 = vmatpush1.msra.mxu0 0.0
        %1242 = vmatprep.subr.mxu0 0.0
        %1243 = vmatpush1.msra.mxu0 0.0
        %1244 = vmatprep.subr.mxu0 0.0
        %1245 = vmatpush1.msra.mxu0 0.0
        %1246 = vmatprep.mubr.f32.mxu0 0.0
        %1247 = vmatmul.mubr.f32.gmra.mrb[0].mxu0 %v1180
        %v1248 = vpop.f32.mrb[0].mxu0
        %v1249 = vadd.f32 0.0, %v1248
        %v1250 = vpop.f32.mrb[0].mxu0
        %1251 = vdwg.mxu0
        %v1252 = vadd.f32 %v1177, %v1249
        %1253 = vst.msk [vmem:[#allocation5] sm:$0xf] %vm761, %v1252
        %v1254 = vld [vmem:[#allocation4] sm:$0xf]
        %v1255 = vld [vmem:[#allocation2] sm:$0xff]
        %v1256 = vld [vmem:[#allocation3] sm:$0xff]
        %1258 = vrot.lane.b32.xlu0 %v1254, 112
        %v1259 = vpop.permute.xlu0 %1258
        %1261 = vrot.lane.b32.xlu0 %v1255, 112
        %v1262 = vpop.permute.xlu0 %1261
        %v1263 = vsel %vm767, %v1259, 0
        %v1265 = vsel %vm767, %v1262, 0
        %1267 = vmatprep.subr.mxu0 0.0
        %1268 = vmatpush1.xpose.msra.mxu0 %v1265
        %1269 = vmatprep.subr.mxu0 0.0
        %1270 = vmatpush1.xpose.msra.mxu0 0.0
        %1271 = vmatprep.subr.mxu0 0.0
        %1272 = vmatpush1.xpose.msra.mxu0 0.0
        %1273 = vmatprep.subr.mxu0 0.0
        %1274 = vmatpush1.xpose.msra.mxu0 0.0
        %1275 = vmatprep.subr.mxu0 0.0
        %1276 = vmatpush1.xpose.msra.mxu0 0.0
        %1277 = vmatprep.subr.mxu0 0.0
        %1278 = vmatpush1.xpose.msra.mxu0 0.0
        %1279 = vmatprep.subr.mxu0 0.0
        %1280 = vmatpush1.xpose.msra.mxu0 0.0
        %1281 = vmatprep.subr.mxu0 0.0
        %1282 = vmatpush1.xpose.msra.mxu0 0.0
        %1283 = vmatprep.subr.mxu0 0.0
        %1284 = vmatpush1.xpose.msra.mxu0 0.0
        %1285 = vmatprep.subr.mxu0 0.0
        %1286 = vmatpush1.xpose.msra.mxu0 0.0
        %1287 = vmatprep.subr.mxu0 0.0
        %1288 = vmatpush1.xpose.msra.mxu0 0.0
        %1289 = vmatprep.subr.mxu0 0.0
        %1290 = vmatpush1.xpose.msra.mxu0 0.0
        %1291 = vmatprep.subr.mxu0 0.0
        %1292 = vmatpush1.xpose.msra.mxu0 0.0
        %1293 = vmatprep.subr.mxu0 0.0
        %1294 = vmatpush1.xpose.msra.mxu0 0.0
        %1295 = vmatprep.subr.mxu0 0.0
        %1296 = vmatpush1.xpose.msra.mxu0 0.0
        %1297 = vmatprep.subr.mxu0 0.0
        %1298 = vmatpush1.xpose.msra.mxu0 0.0
        %1299 = vmatprep.subr.mxu0 0.0
        %1300 = vmatpush1.xpose.msra.mxu0 0.0
        %1301 = vmatprep.subr.mxu0 0.0
        %1302 = vmatpush1.xpose.msra.mxu0 0.0
        %1303 = vmatprep.subr.mxu0 0.0
        %1304 = vmatpush1.xpose.msra.mxu0 0.0
        %1305 = vmatprep.subr.mxu0 0.0
        %1306 = vmatpush1.xpose.msra.mxu0 0.0
        %1307 = vmatprep.subr.mxu0 0.0
        %1308 = vmatpush1.xpose.msra.mxu0 0.0
        %1309 = vmatprep.subr.mxu0 0.0
        %1310 = vmatpush1.xpose.msra.mxu0 0.0
        %1311 = vmatprep.subr.mxu0 0.0
        %1312 = vmatpush1.xpose.msra.mxu0 0.0
        %1313 = vmatprep.subr.mxu0 0.0
        %1314 = vmatpush1.xpose.msra.mxu0 0.0
        %1315 = vmatprep.subr.mxu0 0.0
        %1316 = vmatpush1.xpose.msra.mxu0 0.0
        %1317 = vmatprep.subr.mxu0 0.0
        %1318 = vmatpush1.xpose.msra.mxu0 0.0
        %1319 = vmatprep.subr.mxu0 0.0
        %1320 = vmatpush1.xpose.msra.mxu0 0.0
        %1321 = vmatprep.subr.mxu0 0.0
        %1322 = vmatpush1.xpose.msra.mxu0 0.0
        %1323 = vmatprep.subr.mxu0 0.0
        %1324 = vmatpush1.xpose.msra.mxu0 0.0
        %1325 = vmatprep.subr.mxu0 0.0
        %1326 = vmatpush1.xpose.msra.mxu0 0.0
        %1327 = vmatprep.subr.mxu0 0.0
        %1328 = vmatpush1.xpose.msra.mxu0 0.0
        %1329 = vmatprep.subr.mxu0 0.0
        %1330 = vmatpush1.xpose.msra.mxu0 0.0
        %1331 = vmatprep.mubr.f32.mxu0 0.0
        %1332 = vmatmul.mubr.f32.gmra.mrb[0].mxu0 %v1263
        %v1333 = vpop.f32.mrb[0].mxu0
        %v1334 = vadd.f32 0.0, %v1333
        %v1335 = vpop.f32.mrb[0].mxu0
        %1336 = vdwg.mxu0
        %v1337 = vsel %vm844, %v1334, -inf
        %1338 = vmax.xlane.f32.xlu0 %v1337
        %v1339 = vpop.xlane.xlu0 %1338
        %v1340 = vsub.f32 %v1334, %v1339
        %v1341 = vmul.f32 %v1340, 1.442695
        %v1342 = vpow.pop %v1341
        %v1343 = vsel %vm844, %v1342, 0.0
        %1344 = vadd.xlane.f32.xlu0 %v1343
        %v1345 = vpop.xlane.xlu0 %1344
        %v1346 = vrcp.pop %v1345
        %v1347 = vmul.f32 %v1342, %v1346
        %1349 = vrot.lane.b32.xlu0 %v1256, 112
        %v1350 = vpop.permute.xlu0 %1349
        %v1353 = vsel %vm767, %v1347, 0
        %1355 = vmatprep.subr.mxu0 0.0
        %1356 = vmatpush1.msra.mxu0 %v1350
        %1357 = vmatprep.subr.mxu0 0.0
        %1358 = vmatpush1.msra.mxu0 0.0
        %1359 = vmatprep.subr.mxu0 0.0
        %1360 = vmatpush1.msra.mxu0 0.0
        %1361 = vmatprep.subr.mxu0 0.0
        %1362 = vmatpush1.msra.mxu0 0.0
        %1363 = vmatprep.subr.mxu0 0.0
        %1364 = vmatpush1.msra.mxu0 0.0
        %1365 = vmatprep.subr.mxu0 0.0
        %1366 = vmatpush1.msra.mxu0 0.0
        %1367 = vmatprep.subr.mxu0 0.0
        %1368 = vmatpush1.msra.mxu0 0.0
        %1369 = vmatprep.subr.mxu0 0.0
        %1370 = vmatpush1.msra.mxu0 0.0
        %1371 = vmatprep.subr.mxu0 0.0
        %1372 = vmatpush1.msra.mxu0 0.0
        %1373 = vmatprep.subr.mxu0 0.0
        %1374 = vmatpush1.msra.mxu0 0.0
        %1375 = vmatprep.subr.mxu0 0.0
        %1376 = vmatpush1.msra.mxu0 0.0
        %1377 = vmatprep.subr.mxu0 0.0
        %1378 = vmatpush1.msra.mxu0 0.0
        %1379 = vmatprep.subr.mxu0 0.0
        %1380 = vmatpush1.msra.mxu0 0.0
        %1381 = vmatprep.subr.mxu0 0.0
        %1382 = vmatpush1.msra.mxu0 0.0
        %1383 = vmatprep.subr.mxu0 0.0
        %1384 = vmatpush1.msra.mxu0 0.0
        %1385 = vmatprep.subr.mxu0 0.0
        %1386 = vmatpush1.msra.mxu0 0.0
        %1387 = vmatprep.subr.mxu0 0.0
        %1388 = vmatpush1.msra.mxu0 0.0
        %1389 = vmatprep.subr.mxu0 0.0
        %1390 = vmatpush1.msra.mxu0 0.0
        %1391 = vmatprep.subr.mxu0 0.0
        %1392 = vmatpush1.msra.mxu0 0.0
        %1393 = vmatprep.subr.mxu0 0.0
        %1394 = vmatpush1.msra.mxu0 0.0
        %1395 = vmatprep.subr.mxu0 0.0
        %1396 = vmatpush1.msra.mxu0 0.0
        %1397 = vmatprep.subr.mxu0 0.0
        %1398 = vmatpush1.msra.mxu0 0.0
        %1399 = vmatprep.subr.mxu0 0.0
        %1400 = vmatpush1.msra.mxu0 0.0
        %1401 = vmatprep.subr.mxu0 0.0
        %1402 = vmatpush1.msra.mxu0 0.0
        %1403 = vmatprep.subr.mxu0 0.0
        %1404 = vmatpush1.msra.mxu0 0.0
        %1405 = vmatprep.subr.mxu0 0.0
        %1406 = vmatpush1.msra.mxu0 0.0
        %1407 = vmatprep.subr.mxu0 0.0
        %1408 = vmatpush1.msra.mxu0 0.0
        %1409 = vmatprep.subr.mxu0 0.0
        %1410 = vmatpush1.msra.mxu0 0.0
        %1411 = vmatprep.subr.mxu0 0.0
        %1412 = vmatpush1.msra.mxu0 0.0
        %1413 = vmatprep.subr.mxu0 0.0
        %1414 = vmatpush1.msra.mxu0 0.0
        %1415 = vmatprep.subr.mxu0 0.0
        %1416 = vmatpush1.msra.mxu0 0.0
        %1417 = vmatprep.subr.mxu0 0.0
        %1418 = vmatpush1.msra.mxu0 0.0
        %1419 = vmatprep.mubr.f32.mxu0 0.0
        %1420 = vmatmul.mubr.f32.gmra.mrb[0].mxu0 %v1353
        %v1421 = vpop.f32.mrb[0].mxu0
        %v1422 = vadd.f32 0.0, %v1421
        %v1423 = vpop.f32.mrb[0].mxu0
        %1424 = vdwg.mxu0
        %v1425 = vld [vmem:[#allocation5] sm:$0xf]
        %v1426 = vld [vmem:[#allocation15 + $0x10] sm:$0xff]
        %v1428 = vsel %vm767, %v1422, 0
        %1430 = vmatprep.subr.mxu0 0.0
        %1431 = vmatpush1.msra.mxu0 %v1426
        %1432 = vmatprep.subr.mxu0 0.0
        %1433 = vmatpush1.msra.mxu0 0.0
        %1434 = vmatprep.subr.mxu0 0.0
        %1435 = vmatpush1.msra.mxu0 0.0
        %1436 = vmatprep.subr.mxu0 0.0
        %1437 = vmatpush1.msra.mxu0 0.0
        %1438 = vmatprep.subr.mxu0 0.0
        %1439 = vmatpush1.msra.mxu0 0.0
        %1440 = vmatprep.subr.mxu0 0.0
        %1441 = vmatpush1.msra.mxu0 0.0
        %1442 = vmatprep.subr.mxu0 0.0
        %1443 = vmatpush1.msra.mxu0 0.0
        %1444 = vmatprep.subr.mxu0 0.0
        %1445 = vmatpush1.msra.mxu0 0.0
        %1446 = vmatprep.subr.mxu0 0.0
        %1447 = vmatpush1.msra.mxu0 0.0
        %1448 = vmatprep.subr.mxu0 0.0
        %1449 = vmatpush1.msra.mxu0 0.0
        %1450 = vmatprep.subr.mxu0 0.0
        %1451 = vmatpush1.msra.mxu0 0.0
        %1452 = vmatprep.subr.mxu0 0.0
        %1453 = vmatpush1.msra.mxu0 0.0
        %1454 = vmatprep.subr.mxu0 0.0
        %1455 = vmatpush1.msra.mxu0 0.0
        %1456 = vmatprep.subr.mxu0 0.0
        %1457 = vmatpush1.msra.mxu0 0.0
        %1458 = vmatprep.subr.mxu0 0.0
        %1459 = vmatpush1.msra.mxu0 0.0
        %1460 = vmatprep.subr.mxu0 0.0
        %1461 = vmatpush1.msra.mxu0 0.0
        %1462 = vmatprep.subr.mxu0 0.0
        %1463 = vmatpush1.msra.mxu0 0.0
        %1464 = vmatprep.subr.mxu0 0.0
        %1465 = vmatpush1.msra.mxu0 0.0
        %1466 = vmatprep.subr.mxu0 0.0
        %1467 = vmatpush1.msra.mxu0 0.0
        %1468 = vmatprep.subr.mxu0 0.0
        %1469 = vmatpush1.msra.mxu0 0.0
        %1470 = vmatprep.subr.mxu0 0.0
        %1471 = vmatpush1.msra.mxu0 0.0
        %1472 = vmatprep.subr.mxu0 0.0
        %1473 = vmatpush1.msra.mxu0 0.0
        %1474 = vmatprep.subr.mxu0 0.0
        %1475 = vmatpush1.msra.mxu0 0.0
        %1476 = vmatprep.subr.mxu0 0.0
        %1477 = vmatpush1.msra.mxu0 0.0
        %1478 = vmatprep.subr.mxu0 0.0
        %1479 = vmatpush1.msra.mxu0 0.0
        %1480 = vmatprep.subr.mxu0 0.0
        %1481 = vmatpush1.msra.mxu0 0.0
        %1482 = vmatprep.subr.mxu0 0.0
        %1483 = vmatpush1.msra.mxu0 0.0
        %1484 = vmatprep.subr.mxu0 0.0
        %1485 = vmatpush1.msra.mxu0 0.0
        %1486 = vmatprep.subr.mxu0 0.0
        %1487 = vmatpush1.msra.mxu0 0.0
        %1488 = vmatprep.subr.mxu0 0.0
        %1489 = vmatpush1.msra.mxu0 0.0
        %1490 = vmatprep.subr.mxu0 0.0
        %1491 = vmatpush1.msra.mxu0 0.0
        %1492 = vmatprep.subr.mxu0 0.0
        %1493 = vmatpush1.msra.mxu0 0.0
        %1494 = vmatprep.mubr.f32.mxu0 0.0
        %1495 = vmatmul.mubr.f32.gmra.mrb[0].mxu0 %v1428
        %v1496 = vpop.f32.mrb[0].mxu0
        %v1497 = vadd.f32 0.0, %v1496
        %v1498 = vpop.f32.mrb[0].mxu0
        %1499 = vdwg.mxu0
        %v1500 = vadd.f32 %v1425, %v1497
        %1501 = vst.msk [vmem:[#allocation5] sm:$0xf] %vm761, %v1500
        %v1502 = vld [vmem:[#allocation4] sm:$0xf]
        %v1503 = vld [vmem:[#allocation2] sm:$0xff]
        %v1504 = vld [vmem:[#allocation3] sm:$0xff]
        %1506 = vrot.lane.b32.xlu0 %v1502, 104
        %v1507 = vpop.permute.xlu0 %1506
        %1509 = vrot.lane.b32.xlu0 %v1503, 104
        %v1510 = vpop.permute.xlu0 %1509
        %v1511 = vsel %vm767, %v1507, 0
        %v1513 = vsel %vm767, %v1510, 0
        %1515 = vmatprep.subr.mxu0 0.0
        %1516 = vmatpush1.xpose.msra.mxu0 %v1513
        %1517 = vmatprep.subr.mxu0 0.0
        %1518 = vmatpush1.xpose.msra.mxu0 0.0
        %1519 = vmatprep.subr.mxu0 0.0
        %1520 = vmatpush1.xpose.msra.mxu0 0.0
        %1521 = vmatprep.subr.mxu0 0.0
        %1522 = vmatpush1.xpose.msra.mxu0 0.0
        %1523 = vmatprep.subr.mxu0 0.0
        %1524 = vmatpush1.xpose.msra.mxu0 0.0
        %1525 = vmatprep.subr.mxu0 0.0
        %1526 = vmatpush1.xpose.msra.mxu0 0.0
        %1527 = vmatprep.subr.mxu0 0.0
        %1528 = vmatpush1.xpose.msra.mxu0 0.0
        %1529 = vmatprep.subr.mxu0 0.0
        %1530 = vmatpush1.xpose.msra.mxu0 0.0
        %1531 = vmatprep.subr.mxu0 0.0
        %1532 = vmatpush1.xpose.msra.mxu0 0.0
        %1533 = vmatprep.subr.mxu0 0.0
        %1534 = vmatpush1.xpose.msra.mxu0 0.0
        %1535 = vmatprep.subr.mxu0 0.0
        %1536 = vmatpush1.xpose.msra.mxu0 0.0
        %1537 = vmatprep.subr.mxu0 0.0
        %1538 = vmatpush1.xpose.msra.mxu0 0.0
        %1539 = vmatprep.subr.mxu0 0.0
        %1540 = vmatpush1.xpose.msra.mxu0 0.0
        %1541 = vmatprep.subr.mxu0 0.0
        %1542 = vmatpush1.xpose.msra.mxu0 0.0
        %1543 = vmatprep.subr.mxu0 0.0
        %1544 = vmatpush1.xpose.msra.mxu0 0.0
        %1545 = vmatprep.subr.mxu0 0.0
        %1546 = vmatpush1.xpose.msra.mxu0 0.0
        %1547 = vmatprep.subr.mxu0 0.0
        %1548 = vmatpush1.xpose.msra.mxu0 0.0
        %1549 = vmatprep.subr.mxu0 0.0
        %1550 = vmatpush1.xpose.msra.mxu0 0.0
        %1551 = vmatprep.subr.mxu0 0.0
        %1552 = vmatpush1.xpose.msra.mxu0 0.0
        %1553 = vmatprep.subr.mxu0 0.0
        %1554 = vmatpush1.xpose.msra.mxu0 0.0
        %1555 = vmatprep.subr.mxu0 0.0
        %1556 = vmatpush1.xpose.msra.mxu0 0.0
        %1557 = vmatprep.subr.mxu0 0.0
        %1558 = vmatpush1.xpose.msra.mxu0 0.0
        %1559 = vmatprep.subr.mxu0 0.0
        %1560 = vmatpush1.xpose.msra.mxu0 0.0
        %1561 = vmatprep.subr.mxu0 0.0
        %1562 = vmatpush1.xpose.msra.mxu0 0.0
        %1563 = vmatprep.subr.mxu0 0.0
        %1564 = vmatpush1.xpose.msra.mxu0 0.0
        %1565 = vmatprep.subr.mxu0 0.0
        %1566 = vmatpush1.xpose.msra.mxu0 0.0
        %1567 = vmatprep.subr.mxu0 0.0
        %1568 = vmatpush1.xpose.msra.mxu0 0.0
        %1569 = vmatprep.subr.mxu0 0.0
        %1570 = vmatpush1.xpose.msra.mxu0 0.0
        %1571 = vmatprep.subr.mxu0 0.0
        %1572 = vmatpush1.xpose.msra.mxu0 0.0
        %1573 = vmatprep.subr.mxu0 0.0
        %1574 = vmatpush1.xpose.msra.mxu0 0.0
        %1575 = vmatprep.subr.mxu0 0.0
        %1576 = vmatpush1.xpose.msra.mxu0 0.0
        %1577 = vmatprep.subr.mxu0 0.0
        %1578 = vmatpush1.xpose.msra.mxu0 0.0
        %1579 = vmatprep.mubr.f32.mxu0 0.0
        %1580 = vmatmul.mubr.f32.gmra.mrb[0].mxu0 %v1511
        %v1581 = vpop.f32.mrb[0].mxu0
        %v1582 = vadd.f32 0.0, %v1581
        %v1583 = vpop.f32.mrb[0].mxu0
        %1584 = vdwg.mxu0
        %v1585 = vsel %vm844, %v1582, -inf
        %1586 = vmax.xlane.f32.xlu0 %v1585
        %v1587 = vpop.xlane.xlu0 %1586
        %v1588 = vsub.f32 %v1582, %v1587
        %v1589 = vmul.f32 %v1588, 1.442695
        %v1590 = vpow.pop %v1589
        %v1591 = vsel %vm844, %v1590, 0.0
        %1592 = vadd.xlane.f32.xlu0 %v1591
        %v1593 = vpop.xlane.xlu0 %1592
        %v1594 = vrcp.pop %v1593
        %v1595 = vmul.f32 %v1590, %v1594
        %1597 = vrot.lane.b32.xlu0 %v1504, 104
        %v1598 = vpop.permute.xlu0 %1597
        %v1601 = vsel %vm767, %v1595, 0
        %1603 = vmatprep.subr.mxu0 0.0
        %1604 = vmatpush1.msra.mxu0 %v1598
        %1605 = vmatprep.subr.mxu0 0.0
        %1606 = vmatpush1.msra.mxu0 0.0
        %1607 = vmatprep.subr.mxu0 0.0
        %1608 = vmatpush1.msra.mxu0 0.0
        %1609 = vmatprep.subr.mxu0 0.0
        %1610 = vmatpush1.msra.mxu0 0.0
        %1611 = vmatprep.subr.mxu0 0.0
        %1612 = vmatpush1.msra.mxu0 0.0
        %1613 = vmatprep.subr.mxu0 0.0
        %1614 = vmatpush1.msra.mxu0 0.0
        %1615 = vmatprep.subr.mxu0 0.0
        %1616 = vmatpush1.msra.mxu0 0.0
        %1617 = vmatprep.subr.mxu0 0.0
        %1618 = vmatpush1.msra.mxu0 0.0
        %1619 = vmatprep.subr.mxu0 0.0
        %1620 = vmatpush1.msra.mxu0 0.0
        %1621 = vmatprep.subr.mxu0 0.0
        %1622 = vmatpush1.msra.mxu0 0.0
        %1623 = vmatprep.subr.mxu0 0.0
        %1624 = vmatpush1.msra.mxu0 0.0
        %1625 = vmatprep.subr.mxu0 0.0
        %1626 = vmatpush1.msra.mxu0 0.0
        %1627 = vmatprep.subr.mxu0 0.0
        %1628 = vmatpush1.msra.mxu0 0.0
        %1629 = vmatprep.subr.mxu0 0.0
        %1630 = vmatpush1.msra.mxu0 0.0
        %1631 = vmatprep.subr.mxu0 0.0
        %1632 = vmatpush1.msra.mxu0 0.0
        %1633 = vmatprep.subr.mxu0 0.0
        %1634 = vmatpush1.msra.mxu0 0.0
        %1635 = vmatprep.subr.mxu0 0.0
        %1636 = vmatpush1.msra.mxu0 0.0
        %1637 = vmatprep.subr.mxu0 0.0
        %1638 = vmatpush1.msra.mxu0 0.0
        %1639 = vmatprep.subr.mxu0 0.0
        %1640 = vmatpush1.msra.mxu0 0.0
        %1641 = vmatprep.subr.mxu0 0.0
        %1642 = vmatpush1.msra.mxu0 0.0
        %1643 = vmatprep.subr.mxu0 0.0
        %1644 = vmatpush1.msra.mxu0 0.0
        %1645 = vmatprep.subr.mxu0 0.0
        %1646 = vmatpush1.msra.mxu0 0.0
        %1647 = vmatprep.subr.mxu0 0.0
        %1648 = vmatpush1.msra.mxu0 0.0
        %1649 = vmatprep.subr.mxu0 0.0
        %1650 = vmatpush1.msra.mxu0 0.0
        %1651 = vmatprep.subr.mxu0 0.0
        %1652 = vmatpush1.msra.mxu0 0.0
        %1653 = vmatprep.subr.mxu0 0.0
        %1654 = vmatpush1.msra.mxu0 0.0
        %1655 = vmatprep.subr.mxu0 0.0
        %1656 = vmatpush1.msra.mxu0 0.0
        %1657 = vmatprep.subr.mxu0 0.0
        %1658 = vmatpush1.msra.mxu0 0.0
        %1659 = vmatprep.subr.mxu0 0.0
        %1660 = vmatpush1.msra.mxu0 0.0
        %1661 = vmatprep.subr.mxu0 0.0
        %1662 = vmatpush1.msra.mxu0 0.0
        %1663 = vmatprep.subr.mxu0 0.0
        %1664 = vmatpush1.msra.mxu0 0.0
        %1665 = vmatprep.subr.mxu0 0.0
        %1666 = vmatpush1.msra.mxu0 0.0
        %1667 = vmatprep.mubr.f32.mxu0 0.0
        %1668 = vmatmul.mubr.f32.gmra.mrb[0].mxu0 %v1601
        %v1669 = vpop.f32.mrb[0].mxu0
        %v1670 = vadd.f32 0.0, %v1669
        %v1671 = vpop.f32.mrb[0].mxu0
        %1672 = vdwg.mxu0
        %v1673 = vld [vmem:[#allocation5] sm:$0xf]
        %v1674 = vld [vmem:[#allocation15 + $0x18] sm:$0xff]
        %v1676 = vsel %vm767, %v1670, 0
        %1678 = vmatprep.subr.mxu0 0.0
        %1679 = vmatpush1.msra.mxu0 %v1674
        %1680 = vmatprep.subr.mxu0 0.0
        %1681 = vmatpush1.msra.mxu0 0.0
        %1682 = vmatprep.subr.mxu0 0.0
        %1683 = vmatpush1.msra.mxu0 0.0
        %1684 = vmatprep.subr.mxu0 0.0
        %1685 = vmatpush1.msra.mxu0 0.0
        %1686 = vmatprep.subr.mxu0 0.0
        %1687 = vmatpush1.msra.mxu0 0.0
        %1688 = vmatprep.subr.mxu0 0.0
        %1689 = vmatpush1.msra.mxu0 0.0
        %1690 = vmatprep.subr.mxu0 0.0
        %1691 = vmatpush1.msra.mxu0 0.0
        %1692 = vmatprep.subr.mxu0 0.0
        %1693 = vmatpush1.msra.mxu0 0.0
        %1694 = vmatprep.subr.mxu0 0.0
        %1695 = vmatpush1.msra.mxu0 0.0
        %1696 = vmatprep.subr.mxu0 0.0
        %1697 = vmatpush1.msra.mxu0 0.0
        %1698 = vmatprep.subr.mxu0 0.0
        %1699 = vmatpush1.msra.mxu0 0.0
        %1700 = vmatprep.subr.mxu0 0.0
        %1701 = vmatpush1.msra.mxu0 0.0
        %1702 = vmatprep.subr.mxu0 0.0
        %1703 = vmatpush1.msra.mxu0 0.0
        %1704 = vmatprep.subr.mxu0 0.0
        %1705 = vmatpush1.msra.mxu0 0.0
        %1706 = vmatprep.subr.mxu0 0.0
        %1707 = vmatpush1.msra.mxu0 0.0
        %1708 = vmatprep.subr.mxu0 0.0
        %1709 = vmatpush1.msra.mxu0 0.0
        %1710 = vmatprep.subr.mxu0 0.0
        %1711 = vmatpush1.msra.mxu0 0.0
        %1712 = vmatprep.subr.mxu0 0.0
        %1713 = vmatpush1.msra.mxu0 0.0
        %1714 = vmatprep.subr.mxu0 0.0
        %1715 = vmatpush1.msra.mxu0 0.0
        %1716 = vmatprep.subr.mxu0 0.0
        %1717 = vmatpush1.msra.mxu0 0.0
        %1718 = vmatprep.subr.mxu0 0.0
        %1719 = vmatpush1.msra.mxu0 0.0
        %1720 = vmatprep.subr.mxu0 0.0
        %1721 = vmatpush1.msra.mxu0 0.0
        %1722 = vmatprep.subr.mxu0 0.0
        %1723 = vmatpush1.msra.mxu0 0.0
        %1724 = vmatprep.subr.mxu0 0.0
        %1725 = vmatpush1.msra.mxu0 0.0
        %1726 = vmatprep.subr.mxu0 0.0
        %1727 = vmatpush1.msra.mxu0 0.0
        %1728 = vmatprep.subr.mxu0 0.0
        %1729 = vmatpush1.msra.mxu0 0.0
        %1730 = vmatprep.subr.mxu0 0.0
        %1731 = vmatpush1.msra.mxu0 0.0
        %1732 = vmatprep.subr.mxu0 0.0
        %1733 = vmatpush1.msra.mxu0 0.0
        %1734 = vmatprep.subr.mxu0 0.0
        %1735 = vmatpush1.msra.mxu0 0.0
        %1736 = vmatprep.subr.mxu0 0.0
        %1737 = vmatpush1.msra.mxu0 0.0
        %1738 = vmatprep.subr.mxu0 0.0
        %1739 = vmatpush1.msra.mxu0 0.0
        %1740 = vmatprep.subr.mxu0 0.0
        %1741 = vmatpush1.msra.mxu0 0.0
        %1742 = vmatprep.mubr.f32.mxu0 0.0
        %1743 = vmatmul.mubr.f32.gmra.mrb[0].mxu0 %v1676
        %v1744 = vpop.f32.mrb[0].mxu0
        %v1745 = vadd.f32 0.0, %v1744
        %v1746 = vpop.f32.mrb[0].mxu0
        %1747 = vdwg.mxu0
        %v1748 = vadd.f32 %v1673, %v1745
        %1749 = vst.msk [vmem:[#allocation5] sm:$0xf] %vm761, %v1748
        %v1750 = vld [vmem:[#allocation5] sm:$0xf]
        %v1751 = vld [vmem:[%s9] sm:$0x1]
        %v1753 = vlaneseq
        %v1754 = vshrl.u32 %v1753, 7
        %v1755 = vsub.s32 0, %v1754
        %v1756 = vrot.slane %v1751, %v1755
        %v1758 = vadd.f32 %v1750, %v1756
        %1759 = vst.msk [vmem:[%s498] sm:$0xf] %vm761, %v1758
        %s1760 = sand.u32 %s287, 1
        %s1761 = scalar_lea.sflag [#allocation8], %s1760
        %s1762 = sand.u32 %s287, 1
        %s1763 = smul.addr %s1762, 4
        %s1764 = scalar_lea.vmem [#allocation17], %s1763
        // Predicated region
        $region89: #{tpu_custom_call.1} parent=59 // pred_check
          %p1765 = pneg %p297
        $region90: #{tpu_custom_call.1} parent=59 // pred_check_branch
          %1767 = sbr.rel (%p1765) target = $region92
        $region91: #{tpu_custom_call.1} parent=59 // pred_region
          %s1768 = sadd.s32 %s37, %s39
          %s1770 = ssub.s32 64, 64
          %1771 = vsyncadd %s1761, %s1770
          %s1772 = sadd.s32 %s1768, %s38
          %s1773 = smul.addr %s1772, 64
          %s1774 = scalar_lea.hbm %s10, %s1773
          %s1776 = sshll.u32 %s1764, 4
          %s1777 = int_to_ptr.vmem [resolvable:$true] %s1776
          %1779 = dma.vmem_to_hbm [thread:$0]  %s1777, 64, %s1774, %s1761
        $region92: #{tpu_custom_call.1} parent=59 // pred_fallthru
          _
      $region60: #{tpu_custom_call.1} parent=5 // pred_fallthru
        _
      %p1780 = scmp.le.s32.totalorder 2, %s27
      // Predicated region
      $region93: #{tpu_custom_call.1} parent=5 // pred_check
        %p1781 = pneg %p1780
      $region94: #{tpu_custom_call.1} parent=5 // pred_check_branch
        %1783 = sbr.rel (%p1781) target = $region96
      $region95: #{tpu_custom_call.1} parent=5 // pred_region
        %s1784 = ssub.s32 %s27, 2
        // Predicated region
        $region97: #{tpu_custom_call.1} parent=95 // pred_check
          %p1785 = pneg %p303
        $region98: #{tpu_custom_call.1} parent=95 // pred_check_branch
          %1787 = sbr.rel (%p1785) target = $region100
        $region99: #{tpu_custom_call.1} parent=95 // pred_region
          %s1788 = sand.u32 %s288, 1
          %s1789 = scalar_lea.sflag [#allocation8], %s1788
          %s1790 = sand.u32 %s288, 1
          %s1791 = smul.addr %s1790, 4
          %s1792 = scalar_lea.vmem [#allocation17], %s1791
          %1793 = dma.done %s1789, 64
        $region100: #{tpu_custom_call.1} parent=95 // pred_fallthru
          _
      $region96: #{tpu_custom_call.1} parent=5 // pred_fallthru
        _
    $region6: #{tpu_custom_call.1} parent=1 // loop_footer
      %s31 = sadd.s32 1, %s27
    $region7: #{tpu_custom_call.1} parent=1 // loop_footer_branch
      %26 = sbr.rel target = $region3
    $region8: #{tpu_custom_call.1} parent=1 // loop_exit
      _
    %1794 = vsyncpa [#allocation7], 1
    %s1795 = scalar_lea.sflag [#allocation7], 1
    %1796 = vsyncpa %s1795, 1
    %1797 = vsyncpa [#allocation10], 1
    %s1798 = scalar_lea.sflag [#allocation10], 1
    %1799 = vsyncpa %s1798, 1
    %1800 = vsyncpa [#allocation13], 1
    %1801 = vsyncpa [#allocation16], 1
    %1802 = vsyncpa [#allocation8], 1
    %s1803 = scalar_lea.sflag [#allocation8], 1
    %1804 = vsyncpa %s1803, 1

</llo_original>
